<compile_context>
chip_gen: v7x
topology: tpu7x:2x2x1
jax: 0.10.0
libtpu: 0.0.40
codegen_flags: <defaults>
</compile_context>

<pallas_src>
import jax
import jax.numpy as jnp
import numpy as np
from jax.experimental import pallas as pl
from jax.experimental.pallas import tpu as pltpu

NEG_SLOPE = 0.01   # PyTorch F.leaky_relu default
OUT_PAD = 128      # lane-dense output width for the final [.., 1] head


def _lrelu(v):
    return jnp.maximum(v, NEG_SLOPE * v)


# ----------------------------------------------------------------------------
# Kernel
# ----------------------------------------------------------------------------
def build_kernel(TB, N, F, H, Z, L, plan, n_groups):
    """plan[i] = (group_operand_index, index_within_group) for the i-th
    parameter slice, in the exact order the kernel consumes them."""

    def kernel(*refs):
        x_ref = refs[0]
        grefs = refs[1:1 + n_groups]
        out_ref = refs[1 + n_groups]

        cur = [0]

        def take():
            g, j = plan[cur[0]]
            cur[0] += 1
            return grefs[g][j]          # lazy read right before use

        def mm(a, w):
            # bf16 x bf16 MXU matmul with f32 accumulation (or pure f32).
            return jnp.dot(a.astype(w.dtype), w,
                           preferred_element_type=jnp.float32)

        # ---- local encoder ----
        x = x_ref[...].reshape(TB * N, F)
        w, b = take(), take()
        h = _lrelu(mm(x, w) + b)                       # [TB*N, H]
        w, b = take(), take()
        h = _lrelu(mm(h, w) + b + h)                   # [TB*N, H]

        # ---- initial global features (mean folded into weight) ----
        hs = jnp.sum(h.reshape(TB, N, H), axis=1)      # [TB, H]
        w, b = take(), take()
        xg = _lrelu(mm(hs, w) + b)                     # [TB, H]
        w, b = take(), take()
        xg = _lrelu(mm(xg, w) + b)                     # [TB, Z]

        # ---- EPiC equivariant layers ----
        for _ in range(L):
            ps = jnp.sum(h.reshape(TB, N, H), axis=1)  # [TB, H]
            wp, wz, b = take(), take(), take()
            g1o = _lrelu(mm(ps, wp) + mm(xg, wz) + b)  # [TB, H]
            w, b = take(), take()
            xg = _lrelu(mm(g1o, w) + b + xg)           # [TB, Z]

            wh, wz, b = take(), take(), take()
            gpart = mm(xg, wz) + b                     # [TB, H] (global term, hoisted)
            loc = mm(h, wh).reshape(TB, N, H) + gpart[:, None, :]
            l1o = _lrelu(loc).reshape(TB * N, H)       # [TB*N, H]
            w, b = take(), take()
            h = _lrelu(mm(l1o, w) + b + h)             # [TB*N, H]

        # ---- head ----
        fs = jnp.sum(h.reshape(TB, N, H), axis=1)      # [TB, H]
        wp, wz, b = take(), take(), take()
        o = _lrelu(mm(fs, wp) + mm(xg, wz) + b)        # [TB, H]
        w, b = take(), take()
        o = _lrelu(mm(o, w) + b + o)                   # [TB, H]
        w, b = take(), take()
        out_ref[...] = mm(o, w) + b                    # [TB, OUT_PAD] lane-dense

    return kernel


# ----------------------------------------------------------------------------
# Parameter restructuring + packing (glue code)
# ----------------------------------------------------------------------------
def restructure_params(params, N, H, Z, L, w_dtype):
    """Split / fold the weight_norm'd linears into the slices the kernel uses.

    Emission order MUST match the kernel's take() order."""
    idx = [0]

    def nxt():
        w, b = params[idx[0]], params[idx[0] + 1]
        idx[0] += 2
        return w, b

    slices = []
    addw = lambda w: slices.append(jnp.asarray(w, w_dtype))
    addb = lambda b: slices.append(jnp.asarray(b, jnp.float32))

    w, b = nxt(); addw(w); addb(b)                               # fc_l1
    w, b = nxt(); addw(w); addb(b)                               # fc_l2
    w, b = nxt(); addw(w[:H] / N + w[H:2 * H]); addb(b)          # fc_g1 (mean folded)
    w, b = nxt(); addw(w); addb(b)                               # fc_g2
    for _ in range(L):
        w, b = nxt()                                             # fc_global1
        addw(w[:H] / N + w[H:2 * H]); addw(w[2 * H:]); addb(b)   # pool-folded, xg-part
        w, b = nxt(); addw(w); addb(b)                           # fc_global2
        w, b = nxt()                                             # fc_local1
        addw(w[:H]); addw(w[H:]); addb(b)                        # local part, global part
        w, b = nxt(); addw(w); addb(b)                           # fc_local2
    w, b = nxt()                                                 # fc_g3
    addw(w[:H] / N + w[H:2 * H]); addw(w[2 * H:]); addb(b)
    w, b = nxt(); addw(w); addb(b)                               # fc_g4
    w, b = nxt()                                                 # fc_g5 -> lane-dense pad
    wpad = jnp.zeros((H, OUT_PAD), jnp.float32).at[:, :1].set(w)
    bpad = jnp.zeros((1, OUT_PAD), jnp.float32).at[:, :1].set(b)
    addw(wpad); addb(bpad)
    return slices


def pack_groups(slices):
    """Stack slices of identical (dtype, shape) into one operand each."""
    keys, buckets, plan = [], {}, []
    for arr in slices:
        key = (str(arr.dtype), tuple(arr.shape))
        if key not in buckets:
            buckets[key] = []
            keys.append(key)
        plan.append((keys.index(key), len(buckets[key])))
        buckets[key].append(arr)
    groups = [jnp.stack(buckets[k], axis=0) for k in keys]
    return groups, plan


def _vmem_estimate(tb, N, F, H, param_bytes):
    act = 12 * tb * N * max(H, F) * 4                    # f32 activations + temps
    io = 2 * tb * N * F * 4 + 2 * tb * OUT_PAD * 4       # double-buffered x / out tiles
    return act + io + 2 * param_bytes + (4 << 20)


def _choose_batch_tile(B, N, F, H, param_bytes, budget=24 << 20):
    tb = B
    while tb > 8 and _vmem_estimate(tb, N, F, H, param_bytes) > budget:
        tb = (tb + 1) // 2
    if tb < B:
        tb = max(8, (tb // 8) * 8)   # (8,128) rule on the output block's sublane dim
    return tb


# ----------------------------------------------------------------------------
# Wrapper
# ----------------------------------------------------------------------------
def epic_discriminator_pallas(x, params, *, hid_d, latent, equiv_layers,
                              w_dtype=jnp.bfloat16, batch_tile=None):
    B, N, F = x.shape
    H, Z, L = hid_d, latent, equiv_layers

    slices = restructure_params(params, N, H, Z, L, w_dtype)
    groups, plan = pack_groups(slices)
    param_bytes = sum(int(np.prod(g.shape)) * g.dtype.itemsize for g in groups)

    tb = batch_tile if batch_tile is not None else _choose_batch_tile(
        B, N, F, H, param_bytes)
    tb = min(tb, B)
    b_pad = ((B + tb - 1) // tb) * tb
    xp = x if b_pad == B else jnp.pad(x, ((0, b_pad - B), (0, 0), (0, 0)))
    # TODO(synk): N is assumed sublane-friendly (multiple of 8); padding N with
    # fake points would change the sum-pool semantics without masking.

    kernel = build_kernel(tb, N, F, H, Z, L, plan, len(groups))

    in_specs = [pl.BlockSpec((tb, N, F), lambda i: (i, 0, 0))]
    for g in groups:  # whole (small) parameter group resident, DMA'd once
        in_specs.append(pl.BlockSpec(tuple(g.shape), lambda i: (0, 0, 0)))
    out_specs = pl.BlockSpec((tb, OUT_PAD), lambda i: (i, 0))

    est = _vmem_estimate(tb, N, F, H, param_bytes)
    vmem_limit = int(min(max(2 * est, 32 << 20), 64 << 20))  # v7x-safe cap

    out = pl.pallas_call(
        kernel,
        out_shape=jax.ShapeDtypeStruct((b_pad, OUT_PAD), jnp.float32),
        grid=(b_pad // tb,),
        in_specs=in_specs,
        out_specs=out_specs,
        compiler_params=pltpu.CompilerParams(
            dimension_semantics=("parallel",),
            vmem_limit_bytes=vmem_limit),
    )(xp, *groups)
    return out[:B, :1]


# ----------------------------------------------------------------------------
# Parameter construction (deterministic, mimics weight_norm(nn.Linear(...)))
# ----------------------------------------------------------------------------
def make_wn_linear(key, in_dim, out_dim):
    """Returns (W transposed [in, out], bias [1, out]) with weight_norm applied."""
    k_v, k_g, k_b = jax.random.split(key, 3)
    bound = 1.0 / np.sqrt(in_dim)
    v = jax.random.uniform(k_v, (out_dim, in_dim), jnp.float32, -bound, bound)
    g = jax.random.uniform(k_g, (out_dim,), jnp.float32, 0.5, 1.5)
    b = jax.random.uniform(k_b, (out_dim,), jnp.float32, -bound, bound)
    norm = jnp.sqrt(jnp.sum(v * v, axis=1, keepdims=True))
    w = g[:, None] * v / norm                      # effective weight [out, in]
    return w.T.astype(jnp.float32), b[None, :].astype(jnp.float32)


def make_params(key, feats, hid_d, latent, equiv_layers):
    dims = [
        (feats, hid_d),            # fc_l1
        (hid_d, hid_d),            # fc_l2
        (2 * hid_d, hid_d),        # fc_g1
        (hid_d, latent),           # fc_g2
    ]
    for _ in range(equiv_layers):
        dims += [
            (2 * hid_d + latent, hid_d),   # fc_global1
            (hid_d, latent),               # fc_global2
            (hid_d + latent, hid_d),       # fc_local1
            (hid_d, hid_d),                # fc_local2
        ]
    dims += [
        (2 * hid_d + latent, hid_d),       # fc_g3
        (hid_d, hid_d),                    # fc_g4
        (hid_d, 1),                        # fc_g5
    ]
    keys = jax.random.split(key, len(dims))
    params = []
    for k, (din, dout) in zip(keys, dims):
        w, b = make_wn_linear(k, din, dout)
        params += [w, b]
    return params


# ----------------------------------------------------------------------------
# Pure-JAX f32 reference (mirrors the PyTorch forward exactly)
# ----------------------------------------------------------------------------
def epic_discriminator_ref(x, params, *, hid_d, latent, equiv_layers):
    B, N, F = x.shape
    idx = [0]

    def nxt():
        w, b = params[idx[0]], params[idx[0] + 1]
        idx[0] += 2
        return w, b

    l1 = nxt(); l2 = nxt(); g1 = nxt(); g2 = nxt()
    eq = [(nxt(), nxt(), nxt(), nxt()) for _ in range(equiv_layers)]
    g3 = nxt(); g4 = nxt(); g5 = nxt()

    lrelu = lambda v: jnp.where(v > 0, v, NEG_SLOPE * v)
    lin = lambda a, wb: jnp.dot(a, wb[0]) + wb[1]

    xl = lrelu(lin(x, l1))
    xl = lrelu(lin(xl, l2) + xl)
    xm, xs = jnp.mean(xl, 1), jnp.sum(xl, 1)
    xg = jnp.concatenate([xm, xs], 1)
    xg = lrelu(lin(xg, g1))
    xg = lrelu(lin(xg, g2))
    for eg1, eg2, el1, el2 in eq:
        pm, ps = jnp.mean(xl, 1), jnp.sum(xl, 1)
        cat = jnp.concatenate([pm, ps, xg], 1)
        x1 = lrelu(lin(cat, eg1))
        xg = lrelu(lin(x1, eg2) + xg)
        g2l = jnp.broadcast_to(xg[:, None, :], (B, N, latent))
        cat2 = jnp.concatenate([xl, g2l], 2)
        xl1 = lrelu(lin(cat2, el1))
        xl = lrelu(lin(xl1, el2) + xl)
    xm, xs = jnp.mean(xl, 1), jnp.sum(xl, 1)
    h = jnp.concatenate([xm, xs, xg], 1)
    h = lrelu(lin(h, g3))
    h = lrelu(lin(h, g4) + h)
    return lin(h, g5)


if __name__ == "__main__":
    # Small, forward-consistent shapes.
    B, N, FEATS = 2, 8, 4
    HID_D, LATENT, EQUIV_LAYERS = 32, 8, 2

    key = jax.random.PRNGKey(0)
    k_x, k_p = jax.random.split(key)
    x = jax.random.normal(k_x, (B, N, FEATS), jnp.float32)
    params = make_params(k_p, FEATS, HID_D, LATENT, EQUIV_LAYERS)

    ref = epic_discriminator_ref(
        x, params, hid_d=HID_D, latent=LATENT, equiv_layers=EQUIV_LAYERS)

    # 1) f32 verification run of the restructured kernel (tight tolerance).
    out_f32 = epic_discriminator_pallas(
        x, params, hid_d=HID_D, latent=LATENT, equiv_layers=EQUIV_LAYERS,
        w_dtype=jnp.float32)
    out_f32 = jax.block_until_ready(out_f32)
    np.testing.assert_allclose(np.asarray(out_f32), np.asarray(ref),
                               rtol=1e-3, atol=1e-3)

    # 2) bf16 performance configuration (loose tolerance: bf16 weight /
    #    activation rounding vs the fp32 reference).
    out_bf16 = epic_discriminator_pallas(
        x, params, hid_d=HID_D, latent=LATENT, equiv_layers=EQUIV_LAYERS,
        w_dtype=jnp.bfloat16)
    out_bf16 = jax.block_until_ready(out_bf16)
    np.testing.assert_allclose(np.asarray(out_bf16), np.asarray(ref),
                               rtol=5e-2, atol=5e-2)

    assert out_bf16.shape == (B, 1)
    print("KERNEL_OK")
</pallas_src>

<mosaic_0001>
module attributes {stable_mosaic.version = 11 : i64} {
  func.func @kernel(%arg0: i32, %arg1: memref<2x8x4xf32, #tpu.memory_space<vmem>>, %arg2: memref<1x4x32xf32, #tpu.memory_space<vmem>>, %arg3: memref<11x1x32xf32, #tpu.memory_space<vmem>>, %arg4: memref<10x32x32xf32, #tpu.memory_space<vmem>>, %arg5: memref<3x32x8xf32, #tpu.memory_space<vmem>>, %arg6: memref<3x1x8xf32, #tpu.memory_space<vmem>>, %arg7: memref<5x8x32xf32, #tpu.memory_space<vmem>>, %arg8: memref<1x32x128xf32, #tpu.memory_space<vmem>>, %arg9: memref<1x1x128xf32, #tpu.memory_space<vmem>>, %arg10: memref<2x128xf32, #tpu.memory_space<vmem>>) attributes {dimension_semantics = [#tpu.dimension_semantics<parallel>], iteration_bounds = array<i64: 1>, scalar_prefetch = 0 : i64, scratch_operands = 0 : i64, tpu.core_type = #tpu.core_type<tc>, window_params = [{transform_indices = @transform_0, window_bounds = array<i64: 2, 8, 4>}, {pipeline_mode = #tpu.pipeline_mode<synchronous>, transform_indices = @transform_1, window_bounds = array<i64: 1, 4, 32>}, {pipeline_mode = #tpu.pipeline_mode<synchronous>, transform_indices = @transform_2, window_bounds = array<i64: 11, 1, 32>}, {pipeline_mode = #tpu.pipeline_mode<synchronous>, transform_indices = @transform_3, window_bounds = array<i64: 10, 32, 32>}, {pipeline_mode = #tpu.pipeline_mode<synchronous>, transform_indices = @transform_4, window_bounds = array<i64: 3, 32, 8>}, {pipeline_mode = #tpu.pipeline_mode<synchronous>, transform_indices = @transform_5, window_bounds = array<i64: 3, 1, 8>}, {pipeline_mode = #tpu.pipeline_mode<synchronous>, transform_indices = @transform_6, window_bounds = array<i64: 5, 8, 32>}, {pipeline_mode = #tpu.pipeline_mode<synchronous>, transform_indices = @transform_7, window_bounds = array<i64: 1, 32, 128>}, {pipeline_mode = #tpu.pipeline_mode<synchronous>, transform_indices = @transform_8, window_bounds = array<i64: 1, 1, 128>}, {transform_indices = @transform_9, window_bounds = array<i64: 2, 128>}]} {
    %c0 = arith.constant 0 : index
    %c0_0 = arith.constant 0 : index
    %c0_1 = arith.constant 0 : index
    %0 = vector.load %arg1[%c0, %c0_0, %c0_1] : memref<2x8x4xf32, #tpu.memory_space<vmem>>, vector<2x8x4xf32>
    %1 = vector.shape_cast %0 : vector<2x8x4xf32> to vector<16x4xf32>
    %c0_2 = arith.constant 0 : index
    %c0_3 = arith.constant 0 : index
    %c0_4 = arith.constant 0 : index
    %2 = vector.load %arg2[%c0_2, %c0_3, %c0_4] : memref<1x4x32xf32, #tpu.memory_space<vmem>>, vector<1x4x32xf32>
    %3 = vector.shape_cast %2 : vector<1x4x32xf32> to vector<4x32xf32>
    %c0_5 = arith.constant 0 : index
    %c0_6 = arith.constant 0 : index
    %c0_7 = arith.constant 0 : index
    %4 = vector.load %arg3[%c0_5, %c0_6, %c0_7] : memref<11x1x32xf32, #tpu.memory_space<vmem>>, vector<1x1x32xf32>
    %5 = vector.shape_cast %4 : vector<1x1x32xf32> to vector<1x32xf32>
    %cst = arith.constant dense<0.000000e+00> : vector<16x32xf32>
    %6 = tpu.matmul %1, %3, %cst {dimension_numbers = #tpu.dot_dimension_numbers<[1], [0], [0], [1], [0, 0, 1, 1], [], []>} : vector<16x4xf32>, vector<4x32xf32>, vector<16x32xf32> -> vector<16x32xf32>
    %7 = vector.broadcast %5 : vector<1x32xf32> to vector<16x32xf32>
    %8 = arith.addf %6, %7 : vector<16x32xf32>
    %cst_8 = arith.constant 0.00999999977 : f32
    %9 = vector.broadcast %cst_8 : f32 to vector<16x32xf32>
    %10 = arith.mulf %9, %8 : vector<16x32xf32>
    %11 = arith.maximumf %8, %10 : vector<16x32xf32>
    %c0_9 = arith.constant 0 : index
    %c0_10 = arith.constant 0 : index
    %c0_11 = arith.constant 0 : index
    %12 = vector.load %arg4[%c0_9, %c0_10, %c0_11] : memref<10x32x32xf32, #tpu.memory_space<vmem>>, vector<1x32x32xf32>
    %13 = vector.shape_cast %12 : vector<1x32x32xf32> to vector<32x32xf32>
    %c1 = arith.constant 1 : index
    %c0_12 = arith.constant 0 : index
    %c0_13 = arith.constant 0 : index
    %14 = vector.load %arg3[%c1, %c0_12, %c0_13] : memref<11x1x32xf32, #tpu.memory_space<vmem>>, vector<1x1x32xf32>
    %15 = vector.shape_cast %14 : vector<1x1x32xf32> to vector<1x32xf32>
    %cst_14 = arith.constant dense<0.000000e+00> : vector<16x32xf32>
    %16 = tpu.matmul %11, %13, %cst_14 {dimension_numbers = #tpu.dot_dimension_numbers<[1], [0], [0], [1], [0, 0, 1, 1], [], []>} : vector<16x32xf32>, vector<32x32xf32>, vector<16x32xf32> -> vector<16x32xf32>
    %17 = vector.broadcast %15 : vector<1x32xf32> to vector<16x32xf32>
    %18 = arith.addf %16, %17 : vector<16x32xf32>
    %19 = arith.addf %18, %11 : vector<16x32xf32>
    %cst_15 = arith.constant 0.00999999977 : f32
    %20 = vector.broadcast %cst_15 : f32 to vector<16x32xf32>
    %21 = arith.mulf %20, %19 : vector<16x32xf32>
    %22 = arith.maximumf %19, %21 : vector<16x32xf32>
    %23 = vector.shape_cast %22 : vector<16x32xf32> to vector<2x8x32xf32>
    %cst_16 = arith.constant dense<0.000000e+00> : vector<2x32xf32>
    %24 = vector.multi_reduction <add>, %23, %cst_16 [1] : vector<2x8x32xf32> to vector<2x32xf32>
    %c1_17 = arith.constant 1 : index
    %c0_18 = arith.constant 0 : index
    %c0_19 = arith.constant 0 : index
    %25 = vector.load %arg4[%c1_17, %c0_18, %c0_19] : memref<10x32x32xf32, #tpu.memory_space<vmem>>, vector<1x32x32xf32>
    %26 = vector.shape_cast %25 : vector<1x32x32xf32> to vector<32x32xf32>
    %c2 = arith.constant 2 : index
    %c0_20 = arith.constant 0 : index
    %c0_21 = arith.constant 0 : index
    %27 = vector.load %arg3[%c2, %c0_20, %c0_21] : memref<11x1x32xf32, #tpu.memory_space<vmem>>, vector<1x1x32xf32>
    %28 = vector.shape_cast %27 : vector<1x1x32xf32> to vector<1x32xf32>
    %cst_22 = arith.constant dense<0.000000e+00> : vector<2x32xf32>
    %29 = tpu.matmul %24, %26, %cst_22 {dimension_numbers = #tpu.dot_dimension_numbers<[1], [0], [0], [1], [0, 0, 1, 1], [], []>} : vector<2x32xf32>, vector<32x32xf32>, vector<2x32xf32> -> vector<2x32xf32>
    %30 = vector.broadcast %28 : vector<1x32xf32> to vector<2x32xf32>
    %31 = arith.addf %29, %30 : vector<2x32xf32>
    %cst_23 = arith.constant 0.00999999977 : f32
    %32 = vector.broadcast %cst_23 : f32 to vector<2x32xf32>
    %33 = arith.mulf %32, %31 : vector<2x32xf32>
    %34 = arith.maximumf %31, %33 : vector<2x32xf32>
    %c0_24 = arith.constant 0 : index
    %c0_25 = arith.constant 0 : index
    %c0_26 = arith.constant 0 : index
    %35 = vector.load %arg5[%c0_24, %c0_25, %c0_26] : memref<3x32x8xf32, #tpu.memory_space<vmem>>, vector<1x32x8xf32>
    %36 = vector.shape_cast %35 : vector<1x32x8xf32> to vector<32x8xf32>
    %c0_27 = arith.constant 0 : index
    %c0_28 = arith.constant 0 : index
    %c0_29 = arith.constant 0 : index
    %37 = vector.load %arg6[%c0_27, %c0_28, %c0_29] : memref<3x1x8xf32, #tpu.memory_space<vmem>>, vector<1x1x8xf32>
    %38 = vector.shape_cast %37 : vector<1x1x8xf32> to vector<1x8xf32>
    %cst_30 = arith.constant dense<0.000000e+00> : vector<2x8xf32>
    %39 = tpu.matmul %34, %36, %cst_30 {dimension_numbers = #tpu.dot_dimension_numbers<[1], [0], [0], [1], [0, 0, 1, 1], [], []>} : vector<2x32xf32>, vector<32x8xf32>, vector<2x8xf32> -> vector<2x8xf32>
    %40 = vector.broadcast %38 : vector<1x8xf32> to vector<2x8xf32>
    %41 = arith.addf %39, %40 : vector<2x8xf32>
    %cst_31 = arith.constant 0.00999999977 : f32
    %42 = vector.broadcast %cst_31 : f32 to vector<2x8xf32>
    %43 = arith.mulf %42, %41 : vector<2x8xf32>
    %44 = arith.maximumf %41, %43 : vector<2x8xf32>
    %45 = vector.shape_cast %22 : vector<16x32xf32> to vector<2x8x32xf32>
    %cst_32 = arith.constant dense<0.000000e+00> : vector<2x32xf32>
    %46 = vector.multi_reduction <add>, %45, %cst_32 [1] : vector<2x8x32xf32> to vector<2x32xf32>
    %c2_33 = arith.constant 2 : index
    %c0_34 = arith.constant 0 : index
    %c0_35 = arith.constant 0 : index
    %47 = vector.load %arg4[%c2_33, %c0_34, %c0_35] : memref<10x32x32xf32, #tpu.memory_space<vmem>>, vector<1x32x32xf32>
    %48 = vector.shape_cast %47 : vector<1x32x32xf32> to vector<32x32xf32>
    %c0_36 = arith.constant 0 : index
    %c0_37 = arith.constant 0 : index
    %c0_38 = arith.constant 0 : index
    %49 = vector.load %arg7[%c0_36, %c0_37, %c0_38] : memref<5x8x32xf32, #tpu.memory_space<vmem>>, vector<1x8x32xf32>
    %50 = vector.shape_cast %49 : vector<1x8x32xf32> to vector<8x32xf32>
    %c3 = arith.constant 3 : index
    %c0_39 = arith.constant 0 : index
    %c0_40 = arith.constant 0 : index
    %51 = vector.load %arg3[%c3, %c0_39, %c0_40] : memref<11x1x32xf32, #tpu.memory_space<vmem>>, vector<1x1x32xf32>
    %52 = vector.shape_cast %51 : vector<1x1x32xf32> to vector<1x32xf32>
    %cst_41 = arith.constant dense<0.000000e+00> : vector<2x32xf32>
    %53 = tpu.matmul %46, %48, %cst_41 {dimension_numbers = #tpu.dot_dimension_numbers<[1], [0], [0], [1], [0, 0, 1, 1], [], []>} : vector<2x32xf32>, vector<32x32xf32>, vector<2x32xf32> -> vector<2x32xf32>
    %cst_42 = arith.constant dense<0.000000e+00> : vector<2x32xf32>
    %54 = tpu.matmul %44, %50, %cst_42 {dimension_numbers = #tpu.dot_dimension_numbers<[1], [0], [0], [1], [0, 0, 1, 1], [], []>} : vector<2x8xf32>, vector<8x32xf32>, vector<2x32xf32> -> vector<2x32xf32>
    %55 = arith.addf %53, %54 : vector<2x32xf32>
    %56 = vector.broadcast %52 : vector<1x32xf32> to vector<2x32xf32>
    %57 = arith.addf %55, %56 : vector<2x32xf32>
    %cst_43 = arith.constant 0.00999999977 : f32
    %58 = vector.broadcast %cst_43 : f32 to vector<2x32xf32>
    %59 = arith.mulf %58, %57 : vector<2x32xf32>
    %60 = arith.maximumf %57, %59 : vector<2x32xf32>
    %c1_44 = arith.constant 1 : index
    %c0_45 = arith.constant 0 : index
    %c0_46 = arith.constant 0 : index
    %61 = vector.load %arg5[%c1_44, %c0_45, %c0_46] : memref<3x32x8xf32, #tpu.memory_space<vmem>>, vector<1x32x8xf32>
    %62 = vector.shape_cast %61 : vector<1x32x8xf32> to vector<32x8xf32>
    %c1_47 = arith.constant 1 : index
    %c0_48 = arith.constant 0 : index
    %c0_49 = arith.constant 0 : index
    %63 = vector.load %arg6[%c1_47, %c0_48, %c0_49] : memref<3x1x8xf32, #tpu.memory_space<vmem>>, vector<1x1x8xf32>
    %64 = vector.shape_cast %63 : vector<1x1x8xf32> to vector<1x8xf32>
    %cst_50 = arith.constant dense<0.000000e+00> : vector<2x8xf32>
    %65 = tpu.matmul %60, %62, %cst_50 {dimension_numbers = #tpu.dot_dimension_numbers<[1], [0], [0], [1], [0, 0, 1, 1], [], []>} : vector<2x32xf32>, vector<32x8xf32>, vector<2x8xf32> -> vector<2x8xf32>
    %66 = vector.broadcast %64 : vector<1x8xf32> to vector<2x8xf32>
    %67 = arith.addf %65, %66 : vector<2x8xf32>
    %68 = arith.addf %67, %44 : vector<2x8xf32>
    %cst_51 = arith.constant 0.00999999977 : f32
    %69 = vector.broadcast %cst_51 : f32 to vector<2x8xf32>
    %70 = arith.mulf %69, %68 : vector<2x8xf32>
    %71 = arith.maximumf %68, %70 : vector<2x8xf32>
    %c3_52 = arith.constant 3 : index
    %c0_53 = arith.constant 0 : index
    %c0_54 = arith.constant 0 : index
    %72 = vector.load %arg4[%c3_52, %c0_53, %c0_54] : memref<10x32x32xf32, #tpu.memory_space<vmem>>, vector<1x32x32xf32>
    %73 = vector.shape_cast %72 : vector<1x32x32xf32> to vector<32x32xf32>
    %c1_55 = arith.constant 1 : index
    %c0_56 = arith.constant 0 : index
    %c0_57 = arith.constant 0 : index
    %74 = vector.load %arg7[%c1_55, %c0_56, %c0_57] : memref<5x8x32xf32, #tpu.memory_space<vmem>>, vector<1x8x32xf32>
    %75 = vector.shape_cast %74 : vector<1x8x32xf32> to vector<8x32xf32>
    %c4 = arith.constant 4 : index
    %c0_58 = arith.constant 0 : index
    %c0_59 = arith.constant 0 : index
    %76 = vector.load %arg3[%c4, %c0_58, %c0_59] : memref<11x1x32xf32, #tpu.memory_space<vmem>>, vector<1x1x32xf32>
    %77 = vector.shape_cast %76 : vector<1x1x32xf32> to vector<1x32xf32>
    %cst_60 = arith.constant dense<0.000000e+00> : vector<2x32xf32>
    %78 = tpu.matmul %71, %75, %cst_60 {dimension_numbers = #tpu.dot_dimension_numbers<[1], [0], [0], [1], [0, 0, 1, 1], [], []>} : vector<2x8xf32>, vector<8x32xf32>, vector<2x32xf32> -> vector<2x32xf32>
    %79 = vector.broadcast %77 : vector<1x32xf32> to vector<2x32xf32>
    %80 = arith.addf %78, %79 : vector<2x32xf32>
    %cst_61 = arith.constant dense<0.000000e+00> : vector<16x32xf32>
    %81 = tpu.matmul %22, %73, %cst_61 {dimension_numbers = #tpu.dot_dimension_numbers<[1], [0], [0], [1], [0, 0, 1, 1], [], []>} : vector<16x32xf32>, vector<32x32xf32>, vector<16x32xf32> -> vector<16x32xf32>
    %82 = vector.shape_cast %81 : vector<16x32xf32> to vector<2x8x32xf32>
    %83 = vector.shape_cast %80 : vector<2x32xf32> to vector<2x1x32xf32>
    %84 = vector.broadcast %83 : vector<2x1x32xf32> to vector<2x8x32xf32>
    %85 = arith.addf %82, %84 : vector<2x8x32xf32>
    %cst_62 = arith.constant 0.00999999977 : f32
    %86 = vector.broadcast %cst_62 : f32 to vector<2x8x32xf32>
    %87 = arith.mulf %86, %85 : vector<2x8x32xf32>
    %88 = arith.maximumf %85, %87 : vector<2x8x32xf32>
    %89 = vector.shape_cast %88 : vector<2x8x32xf32> to vector<16x32xf32>
    %c4_63 = arith.constant 4 : index
    %c0_64 = arith.constant 0 : index
    %c0_65 = arith.constant 0 : index
    %90 = vector.load %arg4[%c4_63, %c0_64, %c0_65] : memref<10x32x32xf32, #tpu.memory_space<vmem>>, vector<1x32x32xf32>
    %91 = vector.shape_cast %90 : vector<1x32x32xf32> to vector<32x32xf32>
    %c5 = arith.constant 5 : index
    %c0_66 = arith.constant 0 : index
    %c0_67 = arith.constant 0 : index
    %92 = vector.load %arg3[%c5, %c0_66, %c0_67] : memref<11x1x32xf32, #tpu.memory_space<vmem>>, vector<1x1x32xf32>
    %93 = vector.shape_cast %92 : vector<1x1x32xf32> to vector<1x32xf32>
    %cst_68 = arith.constant dense<0.000000e+00> : vector<16x32xf32>
    %94 = tpu.matmul %89, %91, %cst_68 {dimension_numbers = #tpu.dot_dimension_numbers<[1], [0], [0], [1], [0, 0, 1, 1], [], []>} : vector<16x32xf32>, vector<32x32xf32>, vector<16x32xf32> -> vector<16x32xf32>
    %95 = vector.broadcast %93 : vector<1x32xf32> to vector<16x32xf32>
    %96 = arith.addf %94, %95 : vector<16x32xf32>
    %97 = arith.addf %96, %22 : vector<16x32xf32>
    %cst_69 = arith.constant 0.00999999977 : f32
    %98 = vector.broadcast %cst_69 : f32 to vector<16x32xf32>
    %99 = arith.mulf %98, %97 : vector<16x32xf32>
    %100 = arith.maximumf %97, %99 : vector<16x32xf32>
    %101 = vector.shape_cast %100 : vector<16x32xf32> to vector<2x8x32xf32>
    %cst_70 = arith.constant dense<0.000000e+00> : vector<2x32xf32>
    %102 = vector.multi_reduction <add>, %101, %cst_70 [1] : vector<2x8x32xf32> to vector<2x32xf32>
    %c5_71 = arith.constant 5 : index
    %c0_72 = arith.constant 0 : index
    %c0_73 = arith.constant 0 : index
    %103 = vector.load %arg4[%c5_71, %c0_72, %c0_73] : memref<10x32x32xf32, #tpu.memory_space<vmem>>, vector<1x32x32xf32>
    %104 = vector.shape_cast %103 : vector<1x32x32xf32> to vector<32x32xf32>
    %c2_74 = arith.constant 2 : index
    %c0_75 = arith.constant 0 : index
    %c0_76 = arith.constant 0 : index
    %105 = vector.load %arg7[%c2_74, %c0_75, %c0_76] : memref<5x8x32xf32, #tpu.memory_space<vmem>>, vector<1x8x32xf32>
    %106 = vector.shape_cast %105 : vector<1x8x32xf32> to vector<8x32xf32>
    %c6 = arith.constant 6 : index
    %c0_77 = arith.constant 0 : index
    %c0_78 = arith.constant 0 : index
    %107 = vector.load %arg3[%c6, %c0_77, %c0_78] : memref<11x1x32xf32, #tpu.memory_space<vmem>>, vector<1x1x32xf32>
    %108 = vector.shape_cast %107 : vector<1x1x32xf32> to vector<1x32xf32>
    %cst_79 = arith.constant dense<0.000000e+00> : vector<2x32xf32>
    %109 = tpu.matmul %102, %104, %cst_79 {dimension_numbers = #tpu.dot_dimension_numbers<[1], [0], [0], [1], [0, 0, 1, 1], [], []>} : vector<2x32xf32>, vector<32x32xf32>, vector<2x32xf32> -> vector<2x32xf32>
    %cst_80 = arith.constant dense<0.000000e+00> : vector<2x32xf32>
    %110 = tpu.matmul %71, %106, %cst_80 {dimension_numbers = #tpu.dot_dimension_numbers<[1], [0], [0], [1], [0, 0, 1, 1], [], []>} : vector<2x8xf32>, vector<8x32xf32>, vector<2x32xf32> -> vector<2x32xf32>
    %111 = arith.addf %109, %110 : vector<2x32xf32>
    %112 = vector.broadcast %108 : vector<1x32xf32> to vector<2x32xf32>
    %113 = arith.addf %111, %112 : vector<2x32xf32>
    %cst_81 = arith.constant 0.00999999977 : f32
    %114 = vector.broadcast %cst_81 : f32 to vector<2x32xf32>
    %115 = arith.mulf %114, %113 : vector<2x32xf32>
    %116 = arith.maximumf %113, %115 : vector<2x32xf32>
    %c2_82 = arith.constant 2 : index
    %c0_83 = arith.constant 0 : index
    %c0_84 = arith.constant 0 : index
    %117 = vector.load %arg5[%c2_82, %c0_83, %c0_84] : memref<3x32x8xf32, #tpu.memory_space<vmem>>, vector<1x32x8xf32>
    %118 = vector.shape_cast %117 : vector<1x32x8xf32> to vector<32x8xf32>
    %c2_85 = arith.constant 2 : index
    %c0_86 = arith.constant 0 : index
    %c0_87 = arith.constant 0 : index
    %119 = vector.load %arg6[%c2_85, %c0_86, %c0_87] : memref<3x1x8xf32, #tpu.memory_space<vmem>>, vector<1x1x8xf32>
    %120 = vector.shape_cast %119 : vector<1x1x8xf32> to vector<1x8xf32>
    %cst_88 = arith.constant dense<0.000000e+00> : vector<2x8xf32>
    %121 = tpu.matmul %116, %118, %cst_88 {dimension_numbers = #tpu.dot_dimension_numbers<[1], [0], [0], [1], [0, 0, 1, 1], [], []>} : vector<2x32xf32>, vector<32x8xf32>, vector<2x8xf32> -> vector<2x8xf32>
    %122 = vector.broadcast %120 : vector<1x8xf32> to vector<2x8xf32>
    %123 = arith.addf %121, %122 : vector<2x8xf32>
    %124 = arith.addf %123, %71 : vector<2x8xf32>
    %cst_89 = arith.constant 0.00999999977 : f32
    %125 = vector.broadcast %cst_89 : f32 to vector<2x8xf32>
    %126 = arith.mulf %125, %124 : vector<2x8xf32>
    %127 = arith.maximumf %124, %126 : vector<2x8xf32>
    %c6_90 = arith.constant 6 : index
    %c0_91 = arith.constant 0 : index
    %c0_92 = arith.constant 0 : index
    %128 = vector.load %arg4[%c6_90, %c0_91, %c0_92] : memref<10x32x32xf32, #tpu.memory_space<vmem>>, vector<1x32x32xf32>
    %129 = vector.shape_cast %128 : vector<1x32x32xf32> to vector<32x32xf32>
    %c3_93 = arith.constant 3 : index
    %c0_94 = arith.constant 0 : index
    %c0_95 = arith.constant 0 : index
    %130 = vector.load %arg7[%c3_93, %c0_94, %c0_95] : memref<5x8x32xf32, #tpu.memory_space<vmem>>, vector<1x8x32xf32>
    %131 = vector.shape_cast %130 : vector<1x8x32xf32> to vector<8x32xf32>
    %c7 = arith.constant 7 : index
    %c0_96 = arith.constant 0 : index
    %c0_97 = arith.constant 0 : index
    %132 = vector.load %arg3[%c7, %c0_96, %c0_97] : memref<11x1x32xf32, #tpu.memory_space<vmem>>, vector<1x1x32xf32>
    %133 = vector.shape_cast %132 : vector<1x1x32xf32> to vector<1x32xf32>
    %cst_98 = arith.constant dense<0.000000e+00> : vector<2x32xf32>
    %134 = tpu.matmul %127, %131, %cst_98 {dimension_numbers = #tpu.dot_dimension_numbers<[1], [0], [0], [1], [0, 0, 1, 1], [], []>} : vector<2x8xf32>, vector<8x32xf32>, vector<2x32xf32> -> vector<2x32xf32>
    %135 = vector.broadcast %133 : vector<1x32xf32> to vector<2x32xf32>
    %136 = arith.addf %134, %135 : vector<2x32xf32>
    %cst_99 = arith.constant dense<0.000000e+00> : vector<16x32xf32>
    %137 = tpu.matmul %100, %129, %cst_99 {dimension_numbers = #tpu.dot_dimension_numbers<[1], [0], [0], [1], [0, 0, 1, 1], [], []>} : vector<16x32xf32>, vector<32x32xf32>, vector<16x32xf32> -> vector<16x32xf32>
    %138 = vector.shape_cast %137 : vector<16x32xf32> to vector<2x8x32xf32>
    %139 = vector.shape_cast %136 : vector<2x32xf32> to vector<2x1x32xf32>
    %140 = vector.broadcast %139 : vector<2x1x32xf32> to vector<2x8x32xf32>
    %141 = arith.addf %138, %140 : vector<2x8x32xf32>
    %cst_100 = arith.constant 0.00999999977 : f32
    %142 = vector.broadcast %cst_100 : f32 to vector<2x8x32xf32>
    %143 = arith.mulf %142, %141 : vector<2x8x32xf32>
    %144 = arith.maximumf %141, %143 : vector<2x8x32xf32>
    %145 = vector.shape_cast %144 : vector<2x8x32xf32> to vector<16x32xf32>
    %c7_101 = arith.constant 7 : index
    %c0_102 = arith.constant 0 : index
    %c0_103 = arith.constant 0 : index
    %146 = vector.load %arg4[%c7_101, %c0_102, %c0_103] : memref<10x32x32xf32, #tpu.memory_space<vmem>>, vector<1x32x32xf32>
    %147 = vector.shape_cast %146 : vector<1x32x32xf32> to vector<32x32xf32>
    %c8 = arith.constant 8 : index
    %c0_104 = arith.constant 0 : index
    %c0_105 = arith.constant 0 : index
    %148 = vector.load %arg3[%c8, %c0_104, %c0_105] : memref<11x1x32xf32, #tpu.memory_space<vmem>>, vector<1x1x32xf32>
    %149 = vector.shape_cast %148 : vector<1x1x32xf32> to vector<1x32xf32>
    %cst_106 = arith.constant dense<0.000000e+00> : vector<16x32xf32>
    %150 = tpu.matmul %145, %147, %cst_106 {dimension_numbers = #tpu.dot_dimension_numbers<[1], [0], [0], [1], [0, 0, 1, 1], [], []>} : vector<16x32xf32>, vector<32x32xf32>, vector<16x32xf32> -> vector<16x32xf32>
    %151 = vector.broadcast %149 : vector<1x32xf32> to vector<16x32xf32>
    %152 = arith.addf %150, %151 : vector<16x32xf32>
    %153 = arith.addf %152, %100 : vector<16x32xf32>
    %cst_107 = arith.constant 0.00999999977 : f32
    %154 = vector.broadcast %cst_107 : f32 to vector<16x32xf32>
    %155 = arith.mulf %154, %153 : vector<16x32xf32>
    %156 = arith.maximumf %153, %155 : vector<16x32xf32>
    %157 = vector.shape_cast %156 : vector<16x32xf32> to vector<2x8x32xf32>
    %cst_108 = arith.constant dense<0.000000e+00> : vector<2x32xf32>
    %158 = vector.multi_reduction <add>, %157, %cst_108 [1] : vector<2x8x32xf32> to vector<2x32xf32>
    %c8_109 = arith.constant 8 : index
    %c0_110 = arith.constant 0 : index
    %c0_111 = arith.constant 0 : index
    %159 = vector.load %arg4[%c8_109, %c0_110, %c0_111] : memref<10x32x32xf32, #tpu.memory_space<vmem>>, vector<1x32x32xf32>
    %160 = vector.shape_cast %159 : vector<1x32x32xf32> to vector<32x32xf32>
    %c4_112 = arith.constant 4 : index
    %c0_113 = arith.constant 0 : index
    %c0_114 = arith.constant 0 : index
    %161 = vector.load %arg7[%c4_112, %c0_113, %c0_114] : memref<5x8x32xf32, #tpu.memory_space<vmem>>, vector<1x8x32xf32>
    %162 = vector.shape_cast %161 : vector<1x8x32xf32> to vector<8x32xf32>
    %c9 = arith.constant 9 : index
    %c0_115 = arith.constant 0 : index
    %c0_116 = arith.constant 0 : index
    %163 = vector.load %arg3[%c9, %c0_115, %c0_116] : memref<11x1x32xf32, #tpu.memory_space<vmem>>, vector<1x1x32xf32>
    %164 = vector.shape_cast %163 : vector<1x1x32xf32> to vector<1x32xf32>
    %cst_117 = arith.constant dense<0.000000e+00> : vector<2x32xf32>
    %165 = tpu.matmul %158, %160, %cst_117 {dimension_numbers = #tpu.dot_dimension_numbers<[1], [0], [0], [1], [0, 0, 1, 1], [], []>} : vector<2x32xf32>, vector<32x32xf32>, vector<2x32xf32> -> vector<2x32xf32>
    %cst_118 = arith.constant dense<0.000000e+00> : vector<2x32xf32>
    %166 = tpu.matmul %127, %162, %cst_118 {dimension_numbers = #tpu.dot_dimension_numbers<[1], [0], [0], [1], [0, 0, 1, 1], [], []>} : vector<2x8xf32>, vector<8x32xf32>, vector<2x32xf32> -> vector<2x32xf32>
    %167 = arith.addf %165, %166 : vector<2x32xf32>
    %168 = vector.broadcast %164 : vector<1x32xf32> to vector<2x32xf32>
    %169 = arith.addf %167, %168 : vector<2x32xf32>
    %cst_119 = arith.constant 0.00999999977 : f32
    %170 = vector.broadcast %cst_119 : f32 to vector<2x32xf32>
    %171 = arith.mulf %170, %169 : vector<2x32xf32>
    %172 = arith.maximumf %169, %171 : vector<2x32xf32>
    %c9_120 = arith.constant 9 : index
    %c0_121 = arith.constant 0 : index
    %c0_122 = arith.constant 0 : index
    %173 = vector.load %arg4[%c9_120, %c0_121, %c0_122] : memref<10x32x32xf32, #tpu.memory_space<vmem>>, vector<1x32x32xf32>
    %174 = vector.shape_cast %173 : vector<1x32x32xf32> to vector<32x32xf32>
    %c10 = arith.constant 10 : index
    %c0_123 = arith.constant 0 : index
    %c0_124 = arith.constant 0 : index
    %175 = vector.load %arg3[%c10, %c0_123, %c0_124] : memref<11x1x32xf32, #tpu.memory_space<vmem>>, vector<1x1x32xf32>
    %176 = vector.shape_cast %175 : vector<1x1x32xf32> to vector<1x32xf32>
    %cst_125 = arith.constant dense<0.000000e+00> : vector<2x32xf32>
    %177 = tpu.matmul %172, %174, %cst_125 {dimension_numbers = #tpu.dot_dimension_numbers<[1], [0], [0], [1], [0, 0, 1, 1], [], []>} : vector<2x32xf32>, vector<32x32xf32>, vector<2x32xf32> -> vector<2x32xf32>
    %178 = vector.broadcast %176 : vector<1x32xf32> to vector<2x32xf32>
    %179 = arith.addf %177, %178 : vector<2x32xf32>
    %180 = arith.addf %179, %172 : vector<2x32xf32>
    %cst_126 = arith.constant 0.00999999977 : f32
    %181 = vector.broadcast %cst_126 : f32 to vector<2x32xf32>
    %182 = arith.mulf %181, %180 : vector<2x32xf32>
    %183 = arith.maximumf %180, %182 : vector<2x32xf32>
    %c0_127 = arith.constant 0 : index
    %c0_128 = arith.constant 0 : index
    %c0_129 = arith.constant 0 : index
    %184 = vector.load %arg8[%c0_127, %c0_128, %c0_129] : memref<1x32x128xf32, #tpu.memory_space<vmem>>, vector<1x32x128xf32>
    %185 = vector.shape_cast %184 : vector<1x32x128xf32> to vector<32x128xf32>
    %c0_130 = arith.constant 0 : index
    %c0_131 = arith.constant 0 : index
    %c0_132 = arith.constant 0 : index
    %186 = vector.load %arg9[%c0_130, %c0_131, %c0_132] : memref<1x1x128xf32, #tpu.memory_space<vmem>>, vector<1x1x128xf32>
    %187 = vector.shape_cast %186 : vector<1x1x128xf32> to vector<1x128xf32>
    %cst_133 = arith.constant dense<0.000000e+00> : vector<2x128xf32>
    %188 = tpu.matmul %183, %185, %cst_133 {dimension_numbers = #tpu.dot_dimension_numbers<[1], [0], [0], [1], [0, 0, 1, 1], [], []>} : vector<2x32xf32>, vector<32x128xf32>, vector<2x128xf32> -> vector<2x128xf32>
    %189 = vector.broadcast %187 : vector<1x128xf32> to vector<2x128xf32>
    %190 = arith.addf %188, %189 : vector<2x128xf32>
    %c0_134 = arith.constant 0 : index
    %c0_135 = arith.constant 0 : index
    %191 = vector.load %arg10[%c0_134, %c0_135] : memref<2x128xf32, #tpu.memory_space<vmem>>, vector<2x128xf32>
    tpu.vector_store %arg10[%c0_134, %c0_135], %190 {strides = array<i32>} : memref<2x128xf32, #tpu.memory_space<vmem>>, vector<2x128xf32>,
    return
  }
  func.func @transform_0(%arg0: i32) -> (i32, i32, i32) {
    %c0_i32 = arith.constant 0 : i32
    %c0_i32_0 = arith.constant 0 : i32
    %c0_i32_1 = arith.constant 0 : i32
    return %arg0, %c0_i32, %c0_i32_0 : i32, i32, i32
  }
  func.func @transform_1(%arg0: i32) -> (i32, i32, i32) {
    %c0_i32 = arith.constant 0 : i32
    %c0_i32_0 = arith.constant 0 : i32
    %c0_i32_1 = arith.constant 0 : i32
    %c0_i32_2 = arith.constant 0 : i32
    return %c0_i32, %c0_i32_0, %c0_i32_1 : i32, i32, i32
  }
  func.func @transform_2(%arg0: i32) -> (i32, i32, i32) {
    %c0_i32 = arith.constant 0 : i32
    %c0_i32_0 = arith.constant 0 : i32
    %c0_i32_1 = arith.constant 0 : i32
    %c0_i32_2 = arith.constant 0 : i32
    return %c0_i32, %c0_i32_0, %c0_i32_1 : i32, i32, i32
  }
  func.func @transform_3(%arg0: i32) -> (i32, i32, i32) {
    %c0_i32 = arith.constant 0 : i32
    %c0_i32_0 = arith.constant 0 : i32
    %c0_i32_1 = arith.constant 0 : i32
    %c0_i32_2 = arith.constant 0 : i32
    return %c0_i32, %c0_i32_0, %c0_i32_1 : i32, i32, i32
  }
  func.func @transform_4(%arg0: i32) -> (i32, i32, i32) {
    %c0_i32 = arith.constant 0 : i32
    %c0_i32_0 = arith.constant 0 : i32
    %c0_i32_1 = arith.constant 0 : i32
    %c0_i32_2 = arith.constant 0 : i32
    return %c0_i32, %c0_i32_0, %c0_i32_1 : i32, i32, i32
  }
  func.func @transform_5(%arg0: i32) -> (i32, i32, i32) {
    %c0_i32 = arith.constant 0 : i32
    %c0_i32_0 = arith.constant 0 : i32
    %c0_i32_1 = arith.constant 0 : i32
    %c0_i32_2 = arith.constant 0 : i32
    return %c0_i32, %c0_i32_0, %c0_i32_1 : i32, i32, i32
  }
  func.func @transform_6(%arg0: i32) -> (i32, i32, i32) {
    %c0_i32 = arith.constant 0 : i32
    %c0_i32_0 = arith.constant 0 : i32
    %c0_i32_1 = arith.constant 0 : i32
    %c0_i32_2 = arith.constant 0 : i32
    return %c0_i32, %c0_i32_0, %c0_i32_1 : i32, i32, i32
  }
  func.func @transform_7(%arg0: i32) -> (i32, i32, i32) {
    %c0_i32 = arith.constant 0 : i32
    %c0_i32_0 = arith.constant 0 : i32
    %c0_i32_1 = arith.constant 0 : i32
    %c0_i32_2 = arith.constant 0 : i32
    return %c0_i32, %c0_i32_0, %c0_i32_1 : i32, i32, i32
  }
  func.func @transform_8(%arg0: i32) -> (i32, i32, i32) {
    %c0_i32 = arith.constant 0 : i32
    %c0_i32_0 = arith.constant 0 : i32
    %c0_i32_1 = arith.constant 0 : i32
    %c0_i32_2 = arith.constant 0 : i32
    return %c0_i32, %c0_i32_0, %c0_i32_1 : i32, i32, i32
  }
  func.func @transform_9(%arg0: i32) -> (i32, i32) {
    %c0_i32 = arith.constant 0 : i32
    %c0_i32_0 = arith.constant 0 : i32
    return %arg0, %c0_i32 : i32, i32
  }
}

</mosaic_0001>

<llo_original>
// kernel: tpu_custom_call.1
$region0: #{tpu_custom_call.1}
  #allocation0 [shape = 'u32[]', space=smem, size = 0x4, offset = 0x4, fixed_abs, tag = 'smem constant byte address 0x4 - core index']
  #allocation1 [shape = 'u32[144,128]{1,0:T(1,128)}', space=vmem, size = 0x12000, scoped, tag = 'internal scratch']
  %s0 = inlined_call_operand.vmem [shape: f32[2,8,4], index: 0, kind: input, shape index: {}]
  %s1 = inlined_call_operand.vmem [shape: f32[1,4,32], index: 1, kind: input, shape index: {}]
  %s2 = inlined_call_operand.vmem [shape: f32[11,1,32], index: 2, kind: input, shape index: {}]
  %s3 = inlined_call_operand.hbm [shape: f32[10,32,32], index: 3, kind: input, shape index: {}]
  %s4 = inlined_call_operand.vmem [shape: f32[3,32,8], index: 4, kind: input, shape index: {}]
  %s5 = inlined_call_operand.vmem [shape: f32[3,1,8], index: 5, kind: input, shape index: {}]
  %s6 = inlined_call_operand.vmem [shape: f32[5,8,32], index: 6, kind: input, shape index: {}]
  %s7 = inlined_call_operand.vmem [shape: f32[1,32,128], index: 7, kind: input, shape index: {}]
  %s8 = inlined_call_operand.vmem [shape: f32[1,1,128], index: 8, kind: input, shape index: {}]
  %s9 = inlined_call_operand.hbm [shape: f32[2,128], index: 9, kind: output, shape index: {}]
  %s10 = sld [smem:[#allocation0]]
  $region50: #{tpu_custom_call.1} parent=0
    _
  %s12 = ssub.s32 1, %s10
  %s13 = scalar_select 0, %s12, %s10
  $region1: #{tpu_custom_call.1} parent=0
    #allocation2 [shape = 'u8[163840]{0}', space=vmem, size = 0x28000, scoped, tag = 'input window, operand 3, single buffered']
    #allocation3 [shape = 's32[1]{0}', space=sflag, size = 0x4, scoped, tag = 'scoped memory for tpu_custom_call.1']
    #allocation4 [shape = 's32[1]{0}', space=sflag, size = 0x4, scoped, tag = 'scoped memory for tpu_custom_call.1']
    #allocation5 [shape = 'u8[1024]{0}', space=vmem, size = 0x400, scoped, tag = 'output window, operand 0, single buffered']
    %14 = vsyncpa [#allocation3], 0
    %15 = vsyncpa [#allocation4], 0
    // Predicated region
    $region2: #{tpu_custom_call.1} parent=1 // pred_check
      _
    $region3: #{tpu_custom_call.1} parent=1 // pred_check_branch
      %17 = sbr.rel (0) target = $region5
    $region4: #{tpu_custom_call.1} parent=1 // pred_region
      _
    $region5: #{tpu_custom_call.1} parent=1 // pred_fallthru
      _
    // Predicated region
    $region6: #{tpu_custom_call.1} parent=1 // pred_check
      _
    $region7: #{tpu_custom_call.1} parent=1 // pred_check_branch
      %19 = sbr.rel (0) target = $region9
    $region8: #{tpu_custom_call.1} parent=1 // pred_region
      _
    $region9: #{tpu_custom_call.1} parent=1 // pred_fallthru
      _
    // Predicated region
    $region10: #{tpu_custom_call.1} parent=1 // pred_check
      _
    $region11: #{tpu_custom_call.1} parent=1 // pred_check_branch
      %21 = sbr.rel (0) target = $region13
    $region12: #{tpu_custom_call.1} parent=1 // pred_region
      _
    $region13: #{tpu_custom_call.1} parent=1 // pred_fallthru
      _
    // Predicated region
    $region14: #{tpu_custom_call.1} parent=1 // pred_check
      _
    $region15: #{tpu_custom_call.1} parent=1 // pred_check_branch
      %23 = sbr.rel (0) target = $region17
    $region16: #{tpu_custom_call.1} parent=1 // pred_region
      %s25 = ssub.s32 5120, 5120
      %26 = vsyncadd [#allocation3], %s25
      %s27 = sshll.u32 [#allocation2], 4
      %s28 = int_to_ptr.vmem [resolvable:$true] %s27
      %33 = dma.hbm_to_vmem [thread:$0]  %s3, 5120, %s28, [#allocation3], 128, 128, 8
    $region17: #{tpu_custom_call.1} parent=1 // pred_fallthru
      _
    // Predicated region
    $region18: #{tpu_custom_call.1} parent=1 // pred_check
      _
    $region19: #{tpu_custom_call.1} parent=1 // pred_check_branch
      %35 = sbr.rel (0) target = $region21
    $region20: #{tpu_custom_call.1} parent=1 // pred_region
      _
    $region21: #{tpu_custom_call.1} parent=1 // pred_fallthru
      _
    // Predicated region
    $region22: #{tpu_custom_call.1} parent=1 // pred_check
      _
    $region23: #{tpu_custom_call.1} parent=1 // pred_check_branch
      %37 = sbr.rel (0) target = $region25
    $region24: #{tpu_custom_call.1} parent=1 // pred_region
      _
    $region25: #{tpu_custom_call.1} parent=1 // pred_fallthru
      _
    // Predicated region
    $region26: #{tpu_custom_call.1} parent=1 // pred_check
      _
    $region27: #{tpu_custom_call.1} parent=1 // pred_check_branch
      %39 = sbr.rel (0) target = $region29
    $region28: #{tpu_custom_call.1} parent=1 // pred_region
      _
    $region29: #{tpu_custom_call.1} parent=1 // pred_fallthru
      _
    // Predicated region
    $region30: #{tpu_custom_call.1} parent=1 // pred_check
      _
    $region31: #{tpu_custom_call.1} parent=1 // pred_check_branch
      %41 = sbr.rel (0) target = $region33
    $region32: #{tpu_custom_call.1} parent=1 // pred_region
      _
    $region33: #{tpu_custom_call.1} parent=1 // pred_fallthru
      _
    // Predicated region
    $region34: #{tpu_custom_call.1} parent=1 // pred_check
      _
    $region35: #{tpu_custom_call.1} parent=1 // pred_check_branch
      %43 = sbr.rel (0) target = $region37
    $region36: #{tpu_custom_call.1} parent=1 // pred_region
      _
    $region37: #{tpu_custom_call.1} parent=1 // pred_fallthru
      _
    // Predicated region
    $region38: #{tpu_custom_call.1} parent=1 // pred_check
      _
    $region39: #{tpu_custom_call.1} parent=1 // pred_check_branch
      %45 = sbr.rel (0) target = $region41
    $region40: #{tpu_custom_call.1} parent=1 // pred_region
      %46 = dma.done [#allocation3], 5120
    $region41: #{tpu_custom_call.1} parent=1 // pred_fallthru
      _
    %v47 = vld [vmem:[%s0] sm:$0xff]
    %v48 = vld [vmem:[%s0 + $0x8] sm:$0xff]
    %v49 = vld [vmem:[%s1] sm:$0xf]
    %v50 = vld [vmem:[%s2] sm:$0x1]
    %v52 = vlaneseq
    %v53 = vshrl.u32 %v52, 7
    %v54 = vsub.s32 0, %v53
    %v55 = vrot.slane %v50, %v54
    %vm57 = vcmask 31744
    %v59 = vsel %vm57, %v47, 0
    %v62 = vsel %vm57, %v48, 0
    %vm64 = vcmask 1043456
    %v66 = vsel %vm64, %v49, 0
    %68 = vmatprep.subr.mxu0 0.0
    %69 = vmatpush1.msra.mxu0 %v66
    %70 = vmatprep.subr.mxu0 0.0
    %71 = vmatpush1.msra.mxu0 0.0
    %72 = vmatprep.subr.mxu0 0.0
    %73 = vmatpush1.msra.mxu0 0.0
    %74 = vmatprep.subr.mxu0 0.0
    %75 = vmatpush1.msra.mxu0 0.0
    %76 = vmatprep.subr.mxu0 0.0
    %77 = vmatpush1.msra.mxu0 0.0
    %78 = vmatprep.subr.mxu0 0.0
    %79 = vmatpush1.msra.mxu0 0.0
    %80 = vmatprep.subr.mxu0 0.0
    %81 = vmatpush1.msra.mxu0 0.0
    %82 = vmatprep.subr.mxu0 0.0
    %83 = vmatpush1.msra.mxu0 0.0
    %84 = vmatprep.subr.mxu0 0.0
    %85 = vmatpush1.msra.mxu0 0.0
    %86 = vmatprep.subr.mxu0 0.0
    %87 = vmatpush1.msra.mxu0 0.0
    %88 = vmatprep.subr.mxu0 0.0
    %89 = vmatpush1.msra.mxu0 0.0
    %90 = vmatprep.subr.mxu0 0.0
    %91 = vmatpush1.msra.mxu0 0.0
    %92 = vmatprep.subr.mxu0 0.0
    %93 = vmatpush1.msra.mxu0 0.0
    %94 = vmatprep.subr.mxu0 0.0
    %95 = vmatpush1.msra.mxu0 0.0
    %96 = vmatprep.subr.mxu0 0.0
    %97 = vmatpush1.msra.mxu0 0.0
    %98 = vmatprep.subr.mxu0 0.0
    %99 = vmatpush1.msra.mxu0 0.0
    %100 = vmatprep.subr.mxu0 0.0
    %101 = vmatpush1.msra.mxu0 0.0
    %102 = vmatprep.subr.mxu0 0.0
    %103 = vmatpush1.msra.mxu0 0.0
    %104 = vmatprep.subr.mxu0 0.0
    %105 = vmatpush1.msra.mxu0 0.0
    %106 = vmatprep.subr.mxu0 0.0
    %107 = vmatpush1.msra.mxu0 0.0
    %108 = vmatprep.subr.mxu0 0.0
    %109 = vmatpush1.msra.mxu0 0.0
    %110 = vmatprep.subr.mxu0 0.0
    %111 = vmatpush1.msra.mxu0 0.0
    %112 = vmatprep.subr.mxu0 0.0
    %113 = vmatpush1.msra.mxu0 0.0
    %114 = vmatprep.subr.mxu0 0.0
    %115 = vmatpush1.msra.mxu0 0.0
    %116 = vmatprep.subr.mxu0 0.0
    %117 = vmatpush1.msra.mxu0 0.0
    %118 = vmatprep.subr.mxu0 0.0
    %119 = vmatpush1.msra.mxu0 0.0
    %120 = vmatprep.subr.mxu0 0.0
    %121 = vmatpush1.msra.mxu0 0.0
    %122 = vmatprep.subr.mxu0 0.0
    %123 = vmatpush1.msra.mxu0 0.0
    %124 = vmatprep.subr.mxu0 0.0
    %125 = vmatpush1.msra.mxu0 0.0
    %126 = vmatprep.subr.mxu0 0.0
    %127 = vmatpush1.msra.mxu0 0.0
    %128 = vmatprep.subr.mxu0 0.0
    %129 = vmatpush1.msra.mxu0 0.0
    %130 = vmatprep.subr.mxu0 0.0
    %131 = vmatpush1.msra.mxu0 0.0
    %132 = vmatprep.mubr.f32.mxu0 0.0
    %133 = vmatmul.mubr.f32.gmra.mrb[0].mxu0 %v59
    %v134 = vpop.f32.mrb[0].mxu0
    %v135 = vadd.f32 %v55, %v134
    %v136 = vpop.f32.mrb[0].mxu0
    %137 = vmatprep.mubr.f32.mxu0 0.0
    %138 = vmatmul.mubr.f32.gmra.mrb[0].mxu0 %v62
    %v139 = vpop.f32.mrb[0].mxu0
    %v140 = vadd.f32 %v55, %v139
    %v141 = vpop.f32.mrb[0].mxu0
    %142 = vdwg.mxu0
    %v143 = vmul.f32 %v135, 0.01
    %v144 = vmul.f32 %v140, 0.01
    %v145 = vmax.f32 %v135, %v143
    %v146 = vmax.f32 %v140, %v144
    %v147 = vld [vmem:[#allocation2] sm:$0xff]
    %v148 = vld [vmem:[#allocation2 + $0x8] sm:$0xff]
    %v149 = vld [vmem:[#allocation2 + $0x10] sm:$0xff]
    %v150 = vld [vmem:[#allocation2 + $0x18] sm:$0xff]
    %s151 = scalar_lea.vmem %s2, 1
    %v152 = vld [vmem:[%s151] sm:$0x1]
    %v154 = vlaneseq
    %v155 = vshrl.u32 %v154, 7
    %v156 = vsub.s32 0, %v155
    %v157 = vrot.slane %v152, %v156
    %vm159 = vcmask 261120
    %v161 = vsel %vm159, %v145, 0
    %v164 = vsel %vm159, %v146, 0
    %166 = vmatprep.subr.mxu0 0.0
    %167 = vmatpush1.msra.mxu0 %v147
    %168 = vmatprep.subr.mxu0 0.0
    %169 = vmatpush1.msra.mxu0 %v148
    %170 = vmatprep.subr.mxu0 0.0
    %171 = vmatpush1.msra.mxu0 %v149
    %172 = vmatprep.subr.mxu0 0.0
    %173 = vmatpush1.msra.mxu0 %v150
    %174 = vmatprep.subr.mxu0 0.0
    %175 = vmatpush1.msra.mxu0 0.0
    %176 = vmatprep.subr.mxu0 0.0
    %177 = vmatpush1.msra.mxu0 0.0
    %178 = vmatprep.subr.mxu0 0.0
    %179 = vmatpush1.msra.mxu0 0.0
    %180 = vmatprep.subr.mxu0 0.0
    %181 = vmatpush1.msra.mxu0 0.0
    %182 = vmatprep.subr.mxu0 0.0
    %183 = vmatpush1.msra.mxu0 0.0
    %184 = vmatprep.subr.mxu0 0.0
    %185 = vmatpush1.msra.mxu0 0.0
    %186 = vmatprep.subr.mxu0 0.0
    %187 = vmatpush1.msra.mxu0 0.0
    %188 = vmatprep.subr.mxu0 0.0
    %189 = vmatpush1.msra.mxu0 0.0
    %190 = vmatprep.subr.mxu0 0.0
    %191 = vmatpush1.msra.mxu0 0.0
    %192 = vmatprep.subr.mxu0 0.0
    %193 = vmatpush1.msra.mxu0 0.0
    %194 = vmatprep.subr.mxu0 0.0
    %195 = vmatpush1.msra.mxu0 0.0
    %196 = vmatprep.subr.mxu0 0.0
    %197 = vmatpush1.msra.mxu0 0.0
    %198 = vmatprep.subr.mxu0 0.0
    %199 = vmatpush1.msra.mxu0 0.0
    %200 = vmatprep.subr.mxu0 0.0
    %201 = vmatpush1.msra.mxu0 0.0
    %202 = vmatprep.subr.mxu0 0.0
    %203 = vmatpush1.msra.mxu0 0.0
    %204 = vmatprep.subr.mxu0 0.0
    %205 = vmatpush1.msra.mxu0 0.0
    %206 = vmatprep.subr.mxu0 0.0
    %207 = vmatpush1.msra.mxu0 0.0
    %208 = vmatprep.subr.mxu0 0.0
    %209 = vmatpush1.msra.mxu0 0.0
    %210 = vmatprep.subr.mxu0 0.0
    %211 = vmatpush1.msra.mxu0 0.0
    %212 = vmatprep.subr.mxu0 0.0
    %213 = vmatpush1.msra.mxu0 0.0
    %214 = vmatprep.subr.mxu0 0.0
    %215 = vmatpush1.msra.mxu0 0.0
    %216 = vmatprep.subr.mxu0 0.0
    %217 = vmatpush1.msra.mxu0 0.0
    %218 = vmatprep.subr.mxu0 0.0
    %219 = vmatpush1.msra.mxu0 0.0
    %220 = vmatprep.subr.mxu0 0.0
    %221 = vmatpush1.msra.mxu0 0.0
    %222 = vmatprep.subr.mxu0 0.0
    %223 = vmatpush1.msra.mxu0 0.0
    %224 = vmatprep.subr.mxu0 0.0
    %225 = vmatpush1.msra.mxu0 0.0
    %226 = vmatprep.subr.mxu0 0.0
    %227 = vmatpush1.msra.mxu0 0.0
    %228 = vmatprep.subr.mxu0 0.0
    %229 = vmatpush1.msra.mxu0 0.0
    %230 = vmatprep.mubr.f32.mxu0 0.0
    %231 = vmatmul.mubr.f32.gmra.mrb[0].mxu0 %v161
    %v232 = vpop.f32.mrb[0].mxu0
    %v233 = vadd.f32 %v157, %v232
    %v234 = vpop.f32.mrb[0].mxu0
    %235 = vmatprep.mubr.f32.mxu0 0.0
    %236 = vmatmul.mubr.f32.gmra.mrb[0].mxu0 %v164
    %v237 = vpop.f32.mrb[0].mxu0
    %v238 = vadd.f32 %v157, %v237
    %v239 = vpop.f32.mrb[0].mxu0
    %240 = vdwg.mxu0
    %v241 = vadd.f32 %v233, %v145
    %v242 = vadd.f32 %v238, %v146
    %v243 = vmul.f32 %v241, 0.01
    %v244 = vmul.f32 %v242, 0.01
    %v245 = vmax.f32 %v241, %v243
    %v246 = vmax.f32 %v242, %v244
    %v247 = vsel %vm159, %v245, 0.0
    %v248 = vrot.slane %v247, 4
    %v249 = vadd.f32 %v247, %v248
    %v250 = vrot.slane %v249, 2
    %v251 = vadd.f32 %v249, %v250
    %v252 = vrot.slane %v251, 1
    %v253 = vadd.f32 %v251, %v252
    %v254 = vsel %vm159, %v246, 0.0
    %v255 = vrot.slane %v254, 4
    %v256 = vadd.f32 %v254, %v255
    %v257 = vrot.slane %v256, 2
    %v258 = vadd.f32 %v256, %v257
    %v259 = vrot.slane %v258, 1
    %v260 = vadd.f32 %v258, %v259
    %s261 = scalar_lea.vmem [#allocation2], 32
    %v262 = vld [vmem:[%s261] sm:$0xff]
    %v263 = vld [vmem:[%s261 + $0x8] sm:$0xff]
    %v264 = vld [vmem:[%s261 + $0x10] sm:$0xff]
    %v265 = vld [vmem:[%s261 + $0x18] sm:$0xff]
    %s266 = scalar_lea.vmem %s2, 2
    %v267 = vld [vmem:[%s266] sm:$0x1]
    %v269 = vlaneseq
    %v270 = vshrl.u32 %v269, 7
    %v271 = vsub.s32 0, %v270
    %v272 = vrot.slane %v267, %v271
    %vm276 = vcmask 1041409
    %v277 = vsel %vm276, %v260, %v253
    %v278 = vsel %vm159, %v277, 0
    %280 = vmatprep.subr.mxu0 0.0
    %281 = vmatpush1.msra.mxu0 %v262
    %282 = vmatprep.subr.mxu0 0.0
    %283 = vmatpush1.msra.mxu0 %v263
    %284 = vmatprep.subr.mxu0 0.0
    %285 = vmatpush1.msra.mxu0 %v264
    %286 = vmatprep.subr.mxu0 0.0
    %287 = vmatpush1.msra.mxu0 %v265
    %288 = vmatprep.subr.mxu0 0.0
    %289 = vmatpush1.msra.mxu0 0.0
    %290 = vmatprep.subr.mxu0 0.0
    %291 = vmatpush1.msra.mxu0 0.0
    %292 = vmatprep.subr.mxu0 0.0
    %293 = vmatpush1.msra.mxu0 0.0
    %294 = vmatprep.subr.mxu0 0.0
    %295 = vmatpush1.msra.mxu0 0.0
    %296 = vmatprep.subr.mxu0 0.0
    %297 = vmatpush1.msra.mxu0 0.0
    %298 = vmatprep.subr.mxu0 0.0
    %299 = vmatpush1.msra.mxu0 0.0
    %300 = vmatprep.subr.mxu0 0.0
    %301 = vmatpush1.msra.mxu0 0.0
    %302 = vmatprep.subr.mxu0 0.0
    %303 = vmatpush1.msra.mxu0 0.0
    %304 = vmatprep.subr.mxu0 0.0
    %305 = vmatpush1.msra.mxu0 0.0
    %306 = vmatprep.subr.mxu0 0.0
    %307 = vmatpush1.msra.mxu0 0.0
    %308 = vmatprep.subr.mxu0 0.0
    %309 = vmatpush1.msra.mxu0 0.0
    %310 = vmatprep.subr.mxu0 0.0
    %311 = vmatpush1.msra.mxu0 0.0
    %312 = vmatprep.subr.mxu0 0.0
    %313 = vmatpush1.msra.mxu0 0.0
    %314 = vmatprep.subr.mxu0 0.0
    %315 = vmatpush1.msra.mxu0 0.0
    %316 = vmatprep.subr.mxu0 0.0
    %317 = vmatpush1.msra.mxu0 0.0
    %318 = vmatprep.subr.mxu0 0.0
    %319 = vmatpush1.msra.mxu0 0.0
    %320 = vmatprep.subr.mxu0 0.0
    %321 = vmatpush1.msra.mxu0 0.0
    %322 = vmatprep.subr.mxu0 0.0
    %323 = vmatpush1.msra.mxu0 0.0
    %324 = vmatprep.subr.mxu0 0.0
    %325 = vmatpush1.msra.mxu0 0.0
    %326 = vmatprep.subr.mxu0 0.0
    %327 = vmatpush1.msra.mxu0 0.0
    %328 = vmatprep.subr.mxu0 0.0
    %329 = vmatpush1.msra.mxu0 0.0
    %330 = vmatprep.subr.mxu0 0.0
    %331 = vmatpush1.msra.mxu0 0.0
    %332 = vmatprep.subr.mxu0 0.0
    %333 = vmatpush1.msra.mxu0 0.0
    %334 = vmatprep.subr.mxu0 0.0
    %335 = vmatpush1.msra.mxu0 0.0
    %336 = vmatprep.subr.mxu0 0.0
    %337 = vmatpush1.msra.mxu0 0.0
    %338 = vmatprep.subr.mxu0 0.0
    %339 = vmatpush1.msra.mxu0 0.0
    %340 = vmatprep.subr.mxu0 0.0
    %341 = vmatpush1.msra.mxu0 0.0
    %342 = vmatprep.subr.mxu0 0.0
    %343 = vmatpush1.msra.mxu0 0.0
    %344 = vmatprep.mubr.f32.mxu0 0.0
    %345 = vmatmul.mubr.f32.gmra.mrb[0].mxu0 %v278
    %v346 = vpop.f32.mrb[0].mxu0
    %v347 = vadd.f32 %v272, %v346
    %v348 = vpop.f32.mrb[0].mxu0
    %349 = vdwg.mxu0
    %v350 = vmul.f32 %v347, 0.01
    %v351 = vmax.f32 %v347, %v350
    %v352 = vld [vmem:[%s4] sm:$0xff]
    %v353 = vld [vmem:[%s4 + $0x8] sm:$0xff]
    %v354 = vld [vmem:[%s4 + $0x10] sm:$0xff]
    %v355 = vld [vmem:[%s4 + $0x18] sm:$0xff]
    %v356 = vld [vmem:[%s5] sm:$0x1]
    %v358 = vlaneseq
    %v359 = vshrl.u32 %v358, 7
    %v360 = vsub.s32 0, %v359
    %v361 = vrot.slane %v356, %v360
    %v364 = vsel %vm159, %v351, 0
    %366 = vmatprep.subr.mxu0 0.0
    %367 = vmatpush1.msra.mxu0 %v352
    %368 = vmatprep.subr.mxu0 0.0
    %369 = vmatpush1.msra.mxu0 %v353
    %370 = vmatprep.subr.mxu0 0.0
    %371 = vmatpush1.msra.mxu0 %v354
    %372 = vmatprep.subr.mxu0 0.0
    %373 = vmatpush1.msra.mxu0 %v355
    %374 = vmatprep.subr.mxu0 0.0
    %375 = vmatpush1.msra.mxu0 0.0
    %376 = vmatprep.subr.mxu0 0.0
    %377 = vmatpush1.msra.mxu0 0.0
    %378 = vmatprep.subr.mxu0 0.0
    %379 = vmatpush1.msra.mxu0 0.0
    %380 = vmatprep.subr.mxu0 0.0
    %381 = vmatpush1.msra.mxu0 0.0
    %382 = vmatprep.subr.mxu0 0.0
    %383 = vmatpush1.msra.mxu0 0.0
    %384 = vmatprep.subr.mxu0 0.0
    %385 = vmatpush1.msra.mxu0 0.0
    %386 = vmatprep.subr.mxu0 0.0
    %387 = vmatpush1.msra.mxu0 0.0
    %388 = vmatprep.subr.mxu0 0.0
    %389 = vmatpush1.msra.mxu0 0.0
    %390 = vmatprep.subr.mxu0 0.0
    %391 = vmatpush1.msra.mxu0 0.0
    %392 = vmatprep.subr.mxu0 0.0
    %393 = vmatpush1.msra.mxu0 0.0
    %394 = vmatprep.subr.mxu0 0.0
    %395 = vmatpush1.msra.mxu0 0.0
    %396 = vmatprep.subr.mxu0 0.0
    %397 = vmatpush1.msra.mxu0 0.0
    %398 = vmatprep.subr.mxu0 0.0
    %399 = vmatpush1.msra.mxu0 0.0
    %400 = vmatprep.subr.mxu0 0.0
    %401 = vmatpush1.msra.mxu0 0.0
    %402 = vmatprep.subr.mxu0 0.0
    %403 = vmatpush1.msra.mxu0 0.0
    %404 = vmatprep.subr.mxu0 0.0
    %405 = vmatpush1.msra.mxu0 0.0
    %406 = vmatprep.subr.mxu0 0.0
    %407 = vmatpush1.msra.mxu0 0.0
    %408 = vmatprep.subr.mxu0 0.0
    %409 = vmatpush1.msra.mxu0 0.0
    %410 = vmatprep.subr.mxu0 0.0
    %411 = vmatpush1.msra.mxu0 0.0
    %412 = vmatprep.subr.mxu0 0.0
    %413 = vmatpush1.msra.mxu0 0.0
    %414 = vmatprep.subr.mxu0 0.0
    %415 = vmatpush1.msra.mxu0 0.0
    %416 = vmatprep.subr.mxu0 0.0
    %417 = vmatpush1.msra.mxu0 0.0
    %418 = vmatprep.subr.mxu0 0.0
    %419 = vmatpush1.msra.mxu0 0.0
    %420 = vmatprep.subr.mxu0 0.0
    %421 = vmatpush1.msra.mxu0 0.0
    %422 = vmatprep.subr.mxu0 0.0
    %423 = vmatpush1.msra.mxu0 0.0
    %424 = vmatprep.subr.mxu0 0.0
    %425 = vmatpush1.msra.mxu0 0.0
    %426 = vmatprep.subr.mxu0 0.0
    %427 = vmatpush1.msra.mxu0 0.0
    %428 = vmatprep.subr.mxu0 0.0
    %429 = vmatpush1.msra.mxu0 0.0
    %430 = vmatprep.mubr.f32.mxu0 0.0
    %431 = vmatmul.mubr.f32.gmra.mrb[0].mxu0 %v364
    %v432 = vpop.f32.mrb[0].mxu0
    %v433 = vadd.f32 %v361, %v432
    %v434 = vpop.f32.mrb[0].mxu0
    %435 = vdwg.mxu0
    %v436 = vmul.f32 %v433, 0.01
    %v437 = vmax.f32 %v433, %v436
    %s438 = scalar_lea.vmem [#allocation2], 64
    %v439 = vld [vmem:[%s438] sm:$0xff]
    %v440 = vld [vmem:[%s438 + $0x8] sm:$0xff]
    %v441 = vld [vmem:[%s438 + $0x10] sm:$0xff]
    %v442 = vld [vmem:[%s438 + $0x18] sm:$0xff]
    %v443 = vld [vmem:[%s6] sm:$0xff]
    %s444 = scalar_lea.vmem %s2, 3
    %v445 = vld [vmem:[%s444] sm:$0x1]
    %vm446 = vcmask 64512
    %v448 = vsel %vm446, %v437, 0
    %450 = vmatprep.subr.mxu0 0.0
    %451 = vmatpush1.msra.mxu0 %v443
    %452 = vmatprep.subr.mxu0 0.0
    %453 = vmatpush1.msra.mxu0 0.0
    %454 = vmatprep.subr.mxu0 0.0
    %455 = vmatpush1.msra.mxu0 0.0
    %456 = vmatprep.subr.mxu0 0.0
    %457 = vmatpush1.msra.mxu0 0.0
    %458 = vmatprep.subr.mxu0 0.0
    %459 = vmatpush1.msra.mxu0 0.0
    %460 = vmatprep.subr.mxu0 0.0
    %461 = vmatpush1.msra.mxu0 0.0
    %462 = vmatprep.subr.mxu0 0.0
    %463 = vmatpush1.msra.mxu0 0.0
    %464 = vmatprep.subr.mxu0 0.0
    %465 = vmatpush1.msra.mxu0 0.0
    %466 = vmatprep.subr.mxu0 0.0
    %467 = vmatpush1.msra.mxu0 0.0
    %468 = vmatprep.subr.mxu0 0.0
    %469 = vmatpush1.msra.mxu0 0.0
    %470 = vmatprep.subr.mxu0 0.0
    %471 = vmatpush1.msra.mxu0 0.0
    %472 = vmatprep.subr.mxu0 0.0
    %473 = vmatpush1.msra.mxu0 0.0
    %474 = vmatprep.subr.mxu0 0.0
    %475 = vmatpush1.msra.mxu0 0.0
    %476 = vmatprep.subr.mxu0 0.0
    %477 = vmatpush1.msra.mxu0 0.0
    %478 = vmatprep.subr.mxu0 0.0
    %479 = vmatpush1.msra.mxu0 0.0
    %480 = vmatprep.subr.mxu0 0.0
    %481 = vmatpush1.msra.mxu0 0.0
    %482 = vmatprep.subr.mxu0 0.0
    %483 = vmatpush1.msra.mxu0 0.0
    %484 = vmatprep.subr.mxu0 0.0
    %485 = vmatpush1.msra.mxu0 0.0
    %486 = vmatprep.subr.mxu0 0.0
    %487 = vmatpush1.msra.mxu0 0.0
    %488 = vmatprep.subr.mxu0 0.0
    %489 = vmatpush1.msra.mxu0 0.0
    %490 = vmatprep.subr.mxu0 0.0
    %491 = vmatpush1.msra.mxu0 0.0
    %492 = vmatprep.subr.mxu0 0.0
    %493 = vmatpush1.msra.mxu0 0.0
    %494 = vmatprep.subr.mxu0 0.0
    %495 = vmatpush1.msra.mxu0 0.0
    %496 = vmatprep.subr.mxu0 0.0
    %497 = vmatpush1.msra.mxu0 0.0
    %498 = vmatprep.subr.mxu0 0.0
    %499 = vmatpush1.msra.mxu0 0.0
    %500 = vmatprep.subr.mxu0 0.0
    %501 = vmatpush1.msra.mxu0 0.0
    %502 = vmatprep.subr.mxu0 0.0
    %503 = vmatpush1.msra.mxu0 0.0
    %504 = vmatprep.subr.mxu0 0.0
    %505 = vmatpush1.msra.mxu0 0.0
    %506 = vmatprep.subr.mxu0 0.0
    %507 = vmatpush1.msra.mxu0 0.0
    %508 = vmatprep.subr.mxu0 0.0
    %509 = vmatpush1.msra.mxu0 0.0
    %510 = vmatprep.subr.mxu0 0.0
    %511 = vmatpush1.msra.mxu0 0.0
    %512 = vmatprep.subr.mxu0 0.0
    %513 = vmatpush1.msra.mxu0 0.0
    %514 = vmatprep.mubr.f32.mxu0 0.0
    %515 = vmatmul.mubr.f32.gmra.mrb[0].mxu0 %v448
    %v516 = vpop.f32.mrb[0].mxu0
    %v517 = vadd.f32 0.0, %v516
    %v518 = vpop.f32.mrb[0].mxu0
    %519 = vdwg.mxu0
    %520 = vmatprep.subr.mxu0 0.0
    %521 = vmatpush1.msra.mxu0 %v439
    %522 = vmatprep.subr.mxu0 0.0
    %523 = vmatpush1.msra.mxu0 %v440
    %524 = vmatprep.subr.mxu0 0.0
    %525 = vmatpush1.msra.mxu0 %v441
    %526 = vmatprep.subr.mxu0 0.0
    %527 = vmatpush1.msra.mxu0 %v442
    %528 = vmatprep.subr.mxu0 0.0
    %529 = vmatpush1.msra.mxu0 0.0
    %530 = vmatprep.subr.mxu0 0.0
    %531 = vmatpush1.msra.mxu0 0.0
    %532 = vmatprep.subr.mxu0 0.0
    %533 = vmatpush1.msra.mxu0 0.0
    %534 = vmatprep.subr.mxu0 0.0
    %535 = vmatpush1.msra.mxu0 0.0
    %536 = vmatprep.subr.mxu0 0.0
    %537 = vmatpush1.msra.mxu0 0.0
    %538 = vmatprep.subr.mxu0 0.0
    %539 = vmatpush1.msra.mxu0 0.0
    %540 = vmatprep.subr.mxu0 0.0
    %541 = vmatpush1.msra.mxu0 0.0
    %542 = vmatprep.subr.mxu0 0.0
    %543 = vmatpush1.msra.mxu0 0.0
    %544 = vmatprep.subr.mxu0 0.0
    %545 = vmatpush1.msra.mxu0 0.0
    %546 = vmatprep.subr.mxu0 0.0
    %547 = vmatpush1.msra.mxu0 0.0
    %548 = vmatprep.subr.mxu0 0.0
    %549 = vmatpush1.msra.mxu0 0.0
    %550 = vmatprep.subr.mxu0 0.0
    %551 = vmatpush1.msra.mxu0 0.0
    %552 = vmatprep.subr.mxu0 0.0
    %553 = vmatpush1.msra.mxu0 0.0
    %554 = vmatprep.subr.mxu0 0.0
    %555 = vmatpush1.msra.mxu0 0.0
    %556 = vmatprep.subr.mxu0 0.0
    %557 = vmatpush1.msra.mxu0 0.0
    %558 = vmatprep.subr.mxu0 0.0
    %559 = vmatpush1.msra.mxu0 0.0
    %560 = vmatprep.subr.mxu0 0.0
    %561 = vmatpush1.msra.mxu0 0.0
    %562 = vmatprep.subr.mxu0 0.0
    %563 = vmatpush1.msra.mxu0 0.0
    %564 = vmatprep.subr.mxu0 0.0
    %565 = vmatpush1.msra.mxu0 0.0
    %566 = vmatprep.subr.mxu0 0.0
    %567 = vmatpush1.msra.mxu0 0.0
    %568 = vmatprep.subr.mxu0 0.0
    %569 = vmatpush1.msra.mxu0 0.0
    %570 = vmatprep.subr.mxu0 0.0
    %571 = vmatpush1.msra.mxu0 0.0
    %572 = vmatprep.subr.mxu0 0.0
    %573 = vmatpush1.msra.mxu0 0.0
    %574 = vmatprep.subr.mxu0 0.0
    %575 = vmatpush1.msra.mxu0 0.0
    %576 = vmatprep.subr.mxu0 0.0
    %577 = vmatpush1.msra.mxu0 0.0
    %578 = vmatprep.subr.mxu0 0.0
    %579 = vmatpush1.msra.mxu0 0.0
    %580 = vmatprep.subr.mxu0 0.0
    %581 = vmatpush1.msra.mxu0 0.0
    %582 = vmatprep.subr.mxu0 0.0
    %583 = vmatpush1.msra.mxu0 0.0
    %584 = vmatprep.mubr.f32.mxu0 0.0
    %585 = vmatmul.mubr.f32.gmra.mrb[0].mxu0 %v278
    %v586 = vpop.f32.mrb[0].mxu0
    %v587 = vadd.f32 %v517, %v586
    %v588 = vpop.f32.mrb[0].mxu0
    %589 = vdwg.mxu0
    %v591 = vlaneseq
    %v592 = vshrl.u32 %v591, 7
    %v593 = vsub.s32 0, %v592
    %v594 = vrot.slane %v445, %v593
    %v596 = vadd.f32 %v587, %v594
    %v597 = vmul.f32 %v596, 0.01
    %v598 = vmax.f32 %v596, %v597
    %s599 = scalar_lea.vmem %s4, 32
    %v600 = vld [vmem:[%s599] sm:$0xff]
    %v601 = vld [vmem:[%s599 + $0x8] sm:$0xff]
    %v602 = vld [vmem:[%s599 + $0x10] sm:$0xff]
    %v603 = vld [vmem:[%s599 + $0x18] sm:$0xff]
    %s604 = scalar_lea.vmem %s5, 1
    %v605 = vld [vmem:[%s604] sm:$0x1]
    %v607 = vlaneseq
    %v608 = vshrl.u32 %v607, 7
    %v609 = vsub.s32 0, %v608
    %v610 = vrot.slane %v605, %v609
    %v613 = vsel %vm159, %v598, 0
    %615 = vmatprep.subr.mxu0 0.0
    %616 = vmatpush1.msra.mxu0 %v600
    %617 = vmatprep.subr.mxu0 0.0
    %618 = vmatpush1.msra.mxu0 %v601
    %619 = vmatprep.subr.mxu0 0.0
    %620 = vmatpush1.msra.mxu0 %v602
    %621 = vmatprep.subr.mxu0 0.0
    %622 = vmatpush1.msra.mxu0 %v603
    %623 = vmatprep.subr.mxu0 0.0
    %624 = vmatpush1.msra.mxu0 0.0
    %625 = vmatprep.subr.mxu0 0.0
    %626 = vmatpush1.msra.mxu0 0.0
    %627 = vmatprep.subr.mxu0 0.0
    %628 = vmatpush1.msra.mxu0 0.0
    %629 = vmatprep.subr.mxu0 0.0
    %630 = vmatpush1.msra.mxu0 0.0
    %631 = vmatprep.subr.mxu0 0.0
    %632 = vmatpush1.msra.mxu0 0.0
    %633 = vmatprep.subr.mxu0 0.0
    %634 = vmatpush1.msra.mxu0 0.0
    %635 = vmatprep.subr.mxu0 0.0
    %636 = vmatpush1.msra.mxu0 0.0
    %637 = vmatprep.subr.mxu0 0.0
    %638 = vmatpush1.msra.mxu0 0.0
    %639 = vmatprep.subr.mxu0 0.0
    %640 = vmatpush1.msra.mxu0 0.0
    %641 = vmatprep.subr.mxu0 0.0
    %642 = vmatpush1.msra.mxu0 0.0
    %643 = vmatprep.subr.mxu0 0.0
    %644 = vmatpush1.msra.mxu0 0.0
    %645 = vmatprep.subr.mxu0 0.0
    %646 = vmatpush1.msra.mxu0 0.0
    %647 = vmatprep.subr.mxu0 0.0
    %648 = vmatpush1.msra.mxu0 0.0
    %649 = vmatprep.subr.mxu0 0.0
    %650 = vmatpush1.msra.mxu0 0.0
    %651 = vmatprep.subr.mxu0 0.0
    %652 = vmatpush1.msra.mxu0 0.0
    %653 = vmatprep.subr.mxu0 0.0
    %654 = vmatpush1.msra.mxu0 0.0
    %655 = vmatprep.subr.mxu0 0.0
    %656 = vmatpush1.msra.mxu0 0.0
    %657 = vmatprep.subr.mxu0 0.0
    %658 = vmatpush1.msra.mxu0 0.0
    %659 = vmatprep.subr.mxu0 0.0
    %660 = vmatpush1.msra.mxu0 0.0
    %661 = vmatprep.subr.mxu0 0.0
    %662 = vmatpush1.msra.mxu0 0.0
    %663 = vmatprep.subr.mxu0 0.0
    %664 = vmatpush1.msra.mxu0 0.0
    %665 = vmatprep.subr.mxu0 0.0
    %666 = vmatpush1.msra.mxu0 0.0
    %667 = vmatprep.subr.mxu0 0.0
    %668 = vmatpush1.msra.mxu0 0.0
    %669 = vmatprep.subr.mxu0 0.0
    %670 = vmatpush1.msra.mxu0 0.0
    %671 = vmatprep.subr.mxu0 0.0
    %672 = vmatpush1.msra.mxu0 0.0
    %673 = vmatprep.subr.mxu0 0.0
    %674 = vmatpush1.msra.mxu0 0.0
    %675 = vmatprep.subr.mxu0 0.0
    %676 = vmatpush1.msra.mxu0 0.0
    %677 = vmatprep.subr.mxu0 0.0
    %678 = vmatpush1.msra.mxu0 0.0
    %679 = vmatprep.mubr.f32.mxu0 0.0
    %680 = vmatmul.mubr.f32.gmra.mrb[0].mxu0 %v613
    %v681 = vpop.f32.mrb[0].mxu0
    %v682 = vadd.f32 %v610, %v681
    %v683 = vpop.f32.mrb[0].mxu0
    %684 = vdwg.mxu0
    %v685 = vadd.f32 %v682, %v437
    %v686 = vmul.f32 %v685, 0.01
    %v687 = vmax.f32 %v685, %v686
    %s688 = scalar_lea.vmem [#allocation2], 96
    %v689 = vld [vmem:[%s688] sm:$0xff]
    %v690 = vld [vmem:[%s688 + $0x8] sm:$0xff]
    %v691 = vld [vmem:[%s688 + $0x10] sm:$0xff]
    %v692 = vld [vmem:[%s688 + $0x18] sm:$0xff]
    %s693 = scalar_lea.vmem %s6, 8
    %v694 = vld [vmem:[%s693] sm:$0xff]
    %s695 = scalar_lea.vmem %s2, 4
    %v696 = vld [vmem:[%s695] sm:$0x1]
    %v698 = vlaneseq
    %v699 = vshrl.u32 %v698, 7
    %v700 = vsub.s32 0, %v699
    %v701 = vrot.slane %v696, %v700
    %v704 = vsel %vm446, %v687, 0
    %706 = vmatprep.subr.mxu0 0.0
    %707 = vmatpush1.msra.mxu0 %v694
    %708 = vmatprep.subr.mxu0 0.0
    %709 = vmatpush1.msra.mxu0 0.0
    %710 = vmatprep.subr.mxu0 0.0
    %711 = vmatpush1.msra.mxu0 0.0
    %712 = vmatprep.subr.mxu0 0.0
    %713 = vmatpush1.msra.mxu0 0.0
    %714 = vmatprep.subr.mxu0 0.0
    %715 = vmatpush1.msra.mxu0 0.0
    %716 = vmatprep.subr.mxu0 0.0
    %717 = vmatpush1.msra.mxu0 0.0
    %718 = vmatprep.subr.mxu0 0.0
    %719 = vmatpush1.msra.mxu0 0.0
    %720 = vmatprep.subr.mxu0 0.0
    %721 = vmatpush1.msra.mxu0 0.0
    %722 = vmatprep.subr.mxu0 0.0
    %723 = vmatpush1.msra.mxu0 0.0
    %724 = vmatprep.subr.mxu0 0.0
    %725 = vmatpush1.msra.mxu0 0.0
    %726 = vmatprep.subr.mxu0 0.0
    %727 = vmatpush1.msra.mxu0 0.0
    %728 = vmatprep.subr.mxu0 0.0
    %729 = vmatpush1.msra.mxu0 0.0
    %730 = vmatprep.subr.mxu0 0.0
    %731 = vmatpush1.msra.mxu0 0.0
    %732 = vmatprep.subr.mxu0 0.0
    %733 = vmatpush1.msra.mxu0 0.0
    %734 = vmatprep.subr.mxu0 0.0
    %735 = vmatpush1.msra.mxu0 0.0
    %736 = vmatprep.subr.mxu0 0.0
    %737 = vmatpush1.msra.mxu0 0.0
    %738 = vmatprep.subr.mxu0 0.0
    %739 = vmatpush1.msra.mxu0 0.0
    %740 = vmatprep.subr.mxu0 0.0
    %741 = vmatpush1.msra.mxu0 0.0
    %742 = vmatprep.subr.mxu0 0.0
    %743 = vmatpush1.msra.mxu0 0.0
    %744 = vmatprep.subr.mxu0 0.0
    %745 = vmatpush1.msra.mxu0 0.0
    %746 = vmatprep.subr.mxu0 0.0
    %747 = vmatpush1.msra.mxu0 0.0
    %748 = vmatprep.subr.mxu0 0.0
    %749 = vmatpush1.msra.mxu0 0.0
    %750 = vmatprep.subr.mxu0 0.0
    %751 = vmatpush1.msra.mxu0 0.0
    %752 = vmatprep.subr.mxu0 0.0
    %753 = vmatpush1.msra.mxu0 0.0
    %754 = vmatprep.subr.mxu0 0.0
    %755 = vmatpush1.msra.mxu0 0.0
    %756 = vmatprep.subr.mxu0 0.0
    %757 = vmatpush1.msra.mxu0 0.0
    %758 = vmatprep.subr.mxu0 0.0
    %759 = vmatpush1.msra.mxu0 0.0
    %760 = vmatprep.subr.mxu0 0.0
    %761 = vmatpush1.msra.mxu0 0.0
    %762 = vmatprep.subr.mxu0 0.0
    %763 = vmatpush1.msra.mxu0 0.0
    %764 = vmatprep.subr.mxu0 0.0
    %765 = vmatpush1.msra.mxu0 0.0
    %766 = vmatprep.subr.mxu0 0.0
    %767 = vmatpush1.msra.mxu0 0.0
    %768 = vmatprep.subr.mxu0 0.0
    %769 = vmatpush1.msra.mxu0 0.0
    %770 = vmatprep.mubr.f32.mxu0 0.0
    %771 = vmatmul.mubr.f32.gmra.mrb[0].mxu0 %v704
    %v772 = vpop.f32.mrb[0].mxu0
    %v773 = vadd.f32 %v701, %v772
    %v774 = vpop.f32.mrb[0].mxu0
    %775 = vdwg.mxu0
    %v777 = vsel %vm159, %v245, 0
    %v780 = vsel %vm159, %v246, 0
    %782 = vmatprep.subr.mxu0 0.0
    %783 = vmatpush1.msra.mxu0 %v689
    %784 = vmatprep.subr.mxu0 0.0
    %785 = vmatpush1.msra.mxu0 %v690
    %786 = vmatprep.subr.mxu0 0.0
    %787 = vmatpush1.msra.mxu0 %v691
    %788 = vmatprep.subr.mxu0 0.0
    %789 = vmatpush1.msra.mxu0 %v692
    %790 = vmatprep.subr.mxu0 0.0
    %791 = vmatpush1.msra.mxu0 0.0
    %792 = vmatprep.subr.mxu0 0.0
    %793 = vmatpush1.msra.mxu0 0.0
    %794 = vmatprep.subr.mxu0 0.0
    %795 = vmatpush1.msra.mxu0 0.0
    %796 = vmatprep.subr.mxu0 0.0
    %797 = vmatpush1.msra.mxu0 0.0
    %798 = vmatprep.subr.mxu0 0.0
    %799 = vmatpush1.msra.mxu0 0.0
    %800 = vmatprep.subr.mxu0 0.0
    %801 = vmatpush1.msra.mxu0 0.0
    %802 = vmatprep.subr.mxu0 0.0
    %803 = vmatpush1.msra.mxu0 0.0
    %804 = vmatprep.subr.mxu0 0.0
    %805 = vmatpush1.msra.mxu0 0.0
    %806 = vmatprep.subr.mxu0 0.0
    %807 = vmatpush1.msra.mxu0 0.0
    %808 = vmatprep.subr.mxu0 0.0
    %809 = vmatpush1.msra.mxu0 0.0
    %810 = vmatprep.subr.mxu0 0.0
    %811 = vmatpush1.msra.mxu0 0.0
    %812 = vmatprep.subr.mxu0 0.0
    %813 = vmatpush1.msra.mxu0 0.0
    %814 = vmatprep.subr.mxu0 0.0
    %815 = vmatpush1.msra.mxu0 0.0
    %816 = vmatprep.subr.mxu0 0.0
    %817 = vmatpush1.msra.mxu0 0.0
    %818 = vmatprep.subr.mxu0 0.0
    %819 = vmatpush1.msra.mxu0 0.0
    %820 = vmatprep.subr.mxu0 0.0
    %821 = vmatpush1.msra.mxu0 0.0
    %822 = vmatprep.subr.mxu0 0.0
    %823 = vmatpush1.msra.mxu0 0.0
    %824 = vmatprep.subr.mxu0 0.0
    %825 = vmatpush1.msra.mxu0 0.0
    %826 = vmatprep.subr.mxu0 0.0
    %827 = vmatpush1.msra.mxu0 0.0
    %828 = vmatprep.subr.mxu0 0.0
    %829 = vmatpush1.msra.mxu0 0.0
    %830 = vmatprep.subr.mxu0 0.0
    %831 = vmatpush1.msra.mxu0 0.0
    %832 = vmatprep.subr.mxu0 0.0
    %833 = vmatpush1.msra.mxu0 0.0
    %834 = vmatprep.subr.mxu0 0.0
    %835 = vmatpush1.msra.mxu0 0.0
    %836 = vmatprep.subr.mxu0 0.0
    %837 = vmatpush1.msra.mxu0 0.0
    %838 = vmatprep.subr.mxu0 0.0
    %839 = vmatpush1.msra.mxu0 0.0
    %840 = vmatprep.subr.mxu0 0.0
    %841 = vmatpush1.msra.mxu0 0.0
    %842 = vmatprep.subr.mxu0 0.0
    %843 = vmatpush1.msra.mxu0 0.0
    %844 = vmatprep.subr.mxu0 0.0
    %845 = vmatpush1.msra.mxu0 0.0
    %846 = vmatprep.mubr.f32.mxu0 0.0
    %847 = vmatmul.mubr.f32.gmra.mrb[0].mxu0 %v777
    %v848 = vpop.f32.mrb[0].mxu0
    %v849 = vadd.f32 0.0, %v848
    %v850 = vpop.f32.mrb[0].mxu0
    %851 = vmatprep.mubr.f32.mxu0 0.0
    %852 = vmatmul.mubr.f32.gmra.mrb[0].mxu0 %v780
    %v853 = vpop.f32.mrb[0].mxu0
    %v854 = vadd.f32 0.0, %v853
    %v855 = vpop.f32.mrb[0].mxu0
    %856 = vdwg.mxu0
    %v859 = vunpack.c.l.s4 1966171168
    %v860 = vunpack.c.0.s8 %v859
    %v861 = vlaneseq
    %v862 = vshrl.u32 %v861, 7
    %v863 = vsub.s32 %v860, %v862
    %v864 = vrot.slane %v773, %v863
    %v865 = vcombine.high %v864, %v864
    %v867 = vunpack.c.l.s4 1966171168
    %v868 = vunpack.c.0.s8 %v867
    %v869 = vlaneseq
    %v870 = vshrl.u32 %v869, 7
    %v871 = vsub.s32 %v868, %v870
    %v872 = vrot.slane %v864, %v871
    %v874 = vunpack.c.l.s4 1966171168
    %v875 = vunpack.c.0.s8 %v874
    %v876 = vlaneseq
    %v877 = vshrl.u32 %v876, 7
    %v878 = vsub.s32 %v875, %v877
    %v879 = vrot.slane %v865, %v878
    %v880 = vlaneseq
    %v881 = vshrl.u32 %v880, 7
    %v882 = vsub.s32 0, %v881
    %v883 = vrot.slane %v872, %v882
    %v884 = vlaneseq
    %v885 = vshrl.u32 %v884, 7
    %v886 = vsub.s32 0, %v885
    %v887 = vrot.slane %v879, %v886
    %v890 = vadd.f32 %v849, %v883
    %v891 = vadd.f32 %v854, %v887
    %v892 = vmul.f32 %v890, 0.01
    %v893 = vmul.f32 %v891, 0.01
    %v894 = vmax.f32 %v890, %v892
    %v895 = vmax.f32 %v891, %v893
    %s896 = scalar_lea.vmem [#allocation2], 128
    %v897 = vld [vmem:[%s896] sm:$0xff]
    %v898 = vld [vmem:[%s896 + $0x8] sm:$0xff]
    %v899 = vld [vmem:[%s896 + $0x10] sm:$0xff]
    %v900 = vld [vmem:[%s896 + $0x18] sm:$0xff]
    %s901 = scalar_lea.vmem %s2, 5
    %v902 = vld [vmem:[%s901] sm:$0x1]
    %v904 = vlaneseq
    %v905 = vshrl.u32 %v904, 7
    %v906 = vsub.s32 0, %v905
    %v907 = vrot.slane %v902, %v906
    %v910 = vsel %vm159, %v894, 0
    %v913 = vsel %vm159, %v895, 0
    %915 = vmatprep.subr.mxu0 0.0
    %916 = vmatpush1.msra.mxu0 %v897
    %917 = vmatprep.subr.mxu0 0.0
    %918 = vmatpush1.msra.mxu0 %v898
    %919 = vmatprep.subr.mxu0 0.0
    %920 = vmatpush1.msra.mxu0 %v899
    %921 = vmatprep.subr.mxu0 0.0
    %922 = vmatpush1.msra.mxu0 %v900
    %923 = vmatprep.subr.mxu0 0.0
    %924 = vmatpush1.msra.mxu0 0.0
    %925 = vmatprep.subr.mxu0 0.0
    %926 = vmatpush1.msra.mxu0 0.0
    %927 = vmatprep.subr.mxu0 0.0
    %928 = vmatpush1.msra.mxu0 0.0
    %929 = vmatprep.subr.mxu0 0.0
    %930 = vmatpush1.msra.mxu0 0.0
    %931 = vmatprep.subr.mxu0 0.0
    %932 = vmatpush1.msra.mxu0 0.0
    %933 = vmatprep.subr.mxu0 0.0
    %934 = vmatpush1.msra.mxu0 0.0
    %935 = vmatprep.subr.mxu0 0.0
    %936 = vmatpush1.msra.mxu0 0.0
    %937 = vmatprep.subr.mxu0 0.0
    %938 = vmatpush1.msra.mxu0 0.0
    %939 = vmatprep.subr.mxu0 0.0
    %940 = vmatpush1.msra.mxu0 0.0
    %941 = vmatprep.subr.mxu0 0.0
    %942 = vmatpush1.msra.mxu0 0.0
    %943 = vmatprep.subr.mxu0 0.0
    %944 = vmatpush1.msra.mxu0 0.0
    %945 = vmatprep.subr.mxu0 0.0
    %946 = vmatpush1.msra.mxu0 0.0
    %947 = vmatprep.subr.mxu0 0.0
    %948 = vmatpush1.msra.mxu0 0.0
    %949 = vmatprep.subr.mxu0 0.0
    %950 = vmatpush1.msra.mxu0 0.0
    %951 = vmatprep.subr.mxu0 0.0
    %952 = vmatpush1.msra.mxu0 0.0
    %953 = vmatprep.subr.mxu0 0.0
    %954 = vmatpush1.msra.mxu0 0.0
    %955 = vmatprep.subr.mxu0 0.0
    %956 = vmatpush1.msra.mxu0 0.0
    %957 = vmatprep.subr.mxu0 0.0
    %958 = vmatpush1.msra.mxu0 0.0
    %959 = vmatprep.subr.mxu0 0.0
    %960 = vmatpush1.msra.mxu0 0.0
    %961 = vmatprep.subr.mxu0 0.0
    %962 = vmatpush1.msra.mxu0 0.0
    %963 = vmatprep.subr.mxu0 0.0
    %964 = vmatpush1.msra.mxu0 0.0
    %965 = vmatprep.subr.mxu0 0.0
    %966 = vmatpush1.msra.mxu0 0.0
    %967 = vmatprep.subr.mxu0 0.0
    %968 = vmatpush1.msra.mxu0 0.0
    %969 = vmatprep.subr.mxu0 0.0
    %970 = vmatpush1.msra.mxu0 0.0
    %971 = vmatprep.subr.mxu0 0.0
    %972 = vmatpush1.msra.mxu0 0.0
    %973 = vmatprep.subr.mxu0 0.0
    %974 = vmatpush1.msra.mxu0 0.0
    %975 = vmatprep.subr.mxu0 0.0
    %976 = vmatpush1.msra.mxu0 0.0
    %977 = vmatprep.subr.mxu0 0.0
    %978 = vmatpush1.msra.mxu0 0.0
    %979 = vmatprep.mubr.f32.mxu0 0.0
    %980 = vmatmul.mubr.f32.gmra.mrb[0].mxu0 %v910
    %v981 = vpop.f32.mrb[0].mxu0
    %v982 = vadd.f32 %v907, %v981
    %v983 = vpop.f32.mrb[0].mxu0
    %984 = vmatprep.mubr.f32.mxu0 0.0
    %985 = vmatmul.mubr.f32.gmra.mrb[0].mxu0 %v913
    %v986 = vpop.f32.mrb[0].mxu0
    %v987 = vadd.f32 %v907, %v986
    %v988 = vpop.f32.mrb[0].mxu0
    %989 = vdwg.mxu0
    %v990 = vadd.f32 %v982, %v245
    %v991 = vadd.f32 %v987, %v246
    %v992 = vmul.f32 %v990, 0.01
    %v993 = vmul.f32 %v991, 0.01
    %v994 = vmax.f32 %v990, %v992
    %v995 = vmax.f32 %v991, %v993
    %v996 = vsel %vm159, %v994, 0.0
    %v997 = vrot.slane %v996, 4
    %v998 = vadd.f32 %v996, %v997
    %v999 = vrot.slane %v998, 2
    %v1000 = vadd.f32 %v998, %v999
    %v1001 = vrot.slane %v1000, 1
    %v1002 = vadd.f32 %v1000, %v1001
    %v1003 = vsel %vm159, %v995, 0.0
    %v1004 = vrot.slane %v1003, 4
    %v1005 = vadd.f32 %v1003, %v1004
    %v1006 = vrot.slane %v1005, 2
    %v1007 = vadd.f32 %v1005, %v1006
    %v1008 = vrot.slane %v1007, 1
    %v1009 = vadd.f32 %v1007, %v1008
    %s1010 = scalar_lea.vmem [#allocation2], 160
    %v1011 = vld [vmem:[%s1010] sm:$0xff]
    %v1012 = vld [vmem:[%s1010 + $0x8] sm:$0xff]
    %v1013 = vld [vmem:[%s1010 + $0x10] sm:$0xff]
    %v1014 = vld [vmem:[%s1010 + $0x18] sm:$0xff]
    %s1015 = scalar_lea.vmem %s6, 16
    %v1016 = vld [vmem:[%s1015] sm:$0xff]
    %s1017 = scalar_lea.vmem %s2, 6
    %v1018 = vld [vmem:[%s1017] sm:$0x1]
    %1019 = vmatprep.subr.mxu0 0.0
    %1020 = vmatpush1.msra.mxu0 %v1016
    %1021 = vmatprep.subr.mxu0 0.0
    %1022 = vmatpush1.msra.mxu0 0.0
    %1023 = vmatprep.subr.mxu0 0.0
    %1024 = vmatpush1.msra.mxu0 0.0
    %1025 = vmatprep.subr.mxu0 0.0
    %1026 = vmatpush1.msra.mxu0 0.0
    %1027 = vmatprep.subr.mxu0 0.0
    %1028 = vmatpush1.msra.mxu0 0.0
    %1029 = vmatprep.subr.mxu0 0.0
    %1030 = vmatpush1.msra.mxu0 0.0
    %1031 = vmatprep.subr.mxu0 0.0
    %1032 = vmatpush1.msra.mxu0 0.0
    %1033 = vmatprep.subr.mxu0 0.0
    %1034 = vmatpush1.msra.mxu0 0.0
    %1035 = vmatprep.subr.mxu0 0.0
    %1036 = vmatpush1.msra.mxu0 0.0
    %1037 = vmatprep.subr.mxu0 0.0
    %1038 = vmatpush1.msra.mxu0 0.0
    %1039 = vmatprep.subr.mxu0 0.0
    %1040 = vmatpush1.msra.mxu0 0.0
    %1041 = vmatprep.subr.mxu0 0.0
    %1042 = vmatpush1.msra.mxu0 0.0
    %1043 = vmatprep.subr.mxu0 0.0
    %1044 = vmatpush1.msra.mxu0 0.0
    %1045 = vmatprep.subr.mxu0 0.0
    %1046 = vmatpush1.msra.mxu0 0.0
    %1047 = vmatprep.subr.mxu0 0.0
    %1048 = vmatpush1.msra.mxu0 0.0
    %1049 = vmatprep.subr.mxu0 0.0
    %1050 = vmatpush1.msra.mxu0 0.0
    %1051 = vmatprep.subr.mxu0 0.0
    %1052 = vmatpush1.msra.mxu0 0.0
    %1053 = vmatprep.subr.mxu0 0.0
    %1054 = vmatpush1.msra.mxu0 0.0
    %1055 = vmatprep.subr.mxu0 0.0
    %1056 = vmatpush1.msra.mxu0 0.0
    %1057 = vmatprep.subr.mxu0 0.0
    %1058 = vmatpush1.msra.mxu0 0.0
    %1059 = vmatprep.subr.mxu0 0.0
    %1060 = vmatpush1.msra.mxu0 0.0
    %1061 = vmatprep.subr.mxu0 0.0
    %1062 = vmatpush1.msra.mxu0 0.0
    %1063 = vmatprep.subr.mxu0 0.0
    %1064 = vmatpush1.msra.mxu0 0.0
    %1065 = vmatprep.subr.mxu0 0.0
    %1066 = vmatpush1.msra.mxu0 0.0
    %1067 = vmatprep.subr.mxu0 0.0
    %1068 = vmatpush1.msra.mxu0 0.0
    %1069 = vmatprep.subr.mxu0 0.0
    %1070 = vmatpush1.msra.mxu0 0.0
    %1071 = vmatprep.subr.mxu0 0.0
    %1072 = vmatpush1.msra.mxu0 0.0
    %1073 = vmatprep.subr.mxu0 0.0
    %1074 = vmatpush1.msra.mxu0 0.0
    %1075 = vmatprep.subr.mxu0 0.0
    %1076 = vmatpush1.msra.mxu0 0.0
    %1077 = vmatprep.subr.mxu0 0.0
    %1078 = vmatpush1.msra.mxu0 0.0
    %1079 = vmatprep.subr.mxu0 0.0
    %1080 = vmatpush1.msra.mxu0 0.0
    %1081 = vmatprep.subr.mxu0 0.0
    %1082 = vmatpush1.msra.mxu0 0.0
    %1083 = vmatprep.mubr.f32.mxu0 0.0
    %1084 = vmatmul.mubr.f32.gmra.mrb[0].mxu0 %v704
    %v1085 = vpop.f32.mrb[0].mxu0
    %v1086 = vadd.f32 0.0, %v1085
    %v1087 = vpop.f32.mrb[0].mxu0
    %1088 = vdwg.mxu0
    %v1091 = vsel %vm276, %v1009, %v1002
    %v1092 = vsel %vm159, %v1091, 0
    %1094 = vmatprep.subr.mxu0 0.0
    %1095 = vmatpush1.msra.mxu0 %v1011
    %1096 = vmatprep.subr.mxu0 0.0
    %1097 = vmatpush1.msra.mxu0 %v1012
    %1098 = vmatprep.subr.mxu0 0.0
    %1099 = vmatpush1.msra.mxu0 %v1013
    %1100 = vmatprep.subr.mxu0 0.0
    %1101 = vmatpush1.msra.mxu0 %v1014
    %1102 = vmatprep.subr.mxu0 0.0
    %1103 = vmatpush1.msra.mxu0 0.0
    %1104 = vmatprep.subr.mxu0 0.0
    %1105 = vmatpush1.msra.mxu0 0.0
    %1106 = vmatprep.subr.mxu0 0.0
    %1107 = vmatpush1.msra.mxu0 0.0
    %1108 = vmatprep.subr.mxu0 0.0
    %1109 = vmatpush1.msra.mxu0 0.0
    %1110 = vmatprep.subr.mxu0 0.0
    %1111 = vmatpush1.msra.mxu0 0.0
    %1112 = vmatprep.subr.mxu0 0.0
    %1113 = vmatpush1.msra.mxu0 0.0
    %1114 = vmatprep.subr.mxu0 0.0
    %1115 = vmatpush1.msra.mxu0 0.0
    %1116 = vmatprep.subr.mxu0 0.0
    %1117 = vmatpush1.msra.mxu0 0.0
    %1118 = vmatprep.subr.mxu0 0.0
    %1119 = vmatpush1.msra.mxu0 0.0
    %1120 = vmatprep.subr.mxu0 0.0
    %1121 = vmatpush1.msra.mxu0 0.0
    %1122 = vmatprep.subr.mxu0 0.0
    %1123 = vmatpush1.msra.mxu0 0.0
    %1124 = vmatprep.subr.mxu0 0.0
    %1125 = vmatpush1.msra.mxu0 0.0
    %1126 = vmatprep.subr.mxu0 0.0
    %1127 = vmatpush1.msra.mxu0 0.0
    %1128 = vmatprep.subr.mxu0 0.0
    %1129 = vmatpush1.msra.mxu0 0.0
    %1130 = vmatprep.subr.mxu0 0.0
    %1131 = vmatpush1.msra.mxu0 0.0
    %1132 = vmatprep.subr.mxu0 0.0
    %1133 = vmatpush1.msra.mxu0 0.0
    %1134 = vmatprep.subr.mxu0 0.0
    %1135 = vmatpush1.msra.mxu0 0.0
    %1136 = vmatprep.subr.mxu0 0.0
    %1137 = vmatpush1.msra.mxu0 0.0
    %1138 = vmatprep.subr.mxu0 0.0
    %1139 = vmatpush1.msra.mxu0 0.0
    %1140 = vmatprep.subr.mxu0 0.0
    %1141 = vmatpush1.msra.mxu0 0.0
    %1142 = vmatprep.subr.mxu0 0.0
    %1143 = vmatpush1.msra.mxu0 0.0
    %1144 = vmatprep.subr.mxu0 0.0
    %1145 = vmatpush1.msra.mxu0 0.0
    %1146 = vmatprep.subr.mxu0 0.0
    %1147 = vmatpush1.msra.mxu0 0.0
    %1148 = vmatprep.subr.mxu0 0.0
    %1149 = vmatpush1.msra.mxu0 0.0
    %1150 = vmatprep.subr.mxu0 0.0
    %1151 = vmatpush1.msra.mxu0 0.0
    %1152 = vmatprep.subr.mxu0 0.0
    %1153 = vmatpush1.msra.mxu0 0.0
    %1154 = vmatprep.subr.mxu0 0.0
    %1155 = vmatpush1.msra.mxu0 0.0
    %1156 = vmatprep.subr.mxu0 0.0
    %1157 = vmatpush1.msra.mxu0 0.0
    %1158 = vmatprep.mubr.f32.mxu0 0.0
    %1159 = vmatmul.mubr.f32.gmra.mrb[0].mxu0 %v1092
    %v1160 = vpop.f32.mrb[0].mxu0
    %v1161 = vadd.f32 %v1086, %v1160
    %v1162 = vpop.f32.mrb[0].mxu0
    %1163 = vdwg.mxu0
    %v1165 = vlaneseq
    %v1166 = vshrl.u32 %v1165, 7
    %v1167 = vsub.s32 0, %v1166
    %v1168 = vrot.slane %v1018, %v1167
    %v1170 = vadd.f32 %v1161, %v1168
    %v1171 = vmul.f32 %v1170, 0.01
    %v1172 = vmax.f32 %v1170, %v1171
    %s1173 = scalar_lea.vmem %s4, 64
    %v1174 = vld [vmem:[%s1173] sm:$0xff]
    %v1175 = vld [vmem:[%s1173 + $0x8] sm:$0xff]
    %v1176 = vld [vmem:[%s1173 + $0x10] sm:$0xff]
    %v1177 = vld [vmem:[%s1173 + $0x18] sm:$0xff]
    %s1178 = scalar_lea.vmem %s5, 2
    %v1179 = vld [vmem:[%s1178] sm:$0x1]
    %v1181 = vlaneseq
    %v1182 = vshrl.u32 %v1181, 7
    %v1183 = vsub.s32 0, %v1182
    %v1184 = vrot.slane %v1179, %v1183
    %v1187 = vsel %vm159, %v1172, 0
    %1189 = vmatprep.subr.mxu0 0.0
    %1190 = vmatpush1.msra.mxu0 %v1174
    %1191 = vmatprep.subr.mxu0 0.0
    %1192 = vmatpush1.msra.mxu0 %v1175
    %1193 = vmatprep.subr.mxu0 0.0
    %1194 = vmatpush1.msra.mxu0 %v1176
    %1195 = vmatprep.subr.mxu0 0.0
    %1196 = vmatpush1.msra.mxu0 %v1177
    %1197 = vmatprep.subr.mxu0 0.0
    %1198 = vmatpush1.msra.mxu0 0.0
    %1199 = vmatprep.subr.mxu0 0.0
    %1200 = vmatpush1.msra.mxu0 0.0
    %1201 = vmatprep.subr.mxu0 0.0
    %1202 = vmatpush1.msra.mxu0 0.0
    %1203 = vmatprep.subr.mxu0 0.0
    %1204 = vmatpush1.msra.mxu0 0.0
    %1205 = vmatprep.subr.mxu0 0.0
    %1206 = vmatpush1.msra.mxu0 0.0
    %1207 = vmatprep.subr.mxu0 0.0
    %1208 = vmatpush1.msra.mxu0 0.0
    %1209 = vmatprep.subr.mxu0 0.0
    %1210 = vmatpush1.msra.mxu0 0.0
    %1211 = vmatprep.subr.mxu0 0.0
    %1212 = vmatpush1.msra.mxu0 0.0
    %1213 = vmatprep.subr.mxu0 0.0
    %1214 = vmatpush1.msra.mxu0 0.0
    %1215 = vmatprep.subr.mxu0 0.0
    %1216 = vmatpush1.msra.mxu0 0.0
    %1217 = vmatprep.subr.mxu0 0.0
    %1218 = vmatpush1.msra.mxu0 0.0
    %1219 = vmatprep.subr.mxu0 0.0
    %1220 = vmatpush1.msra.mxu0 0.0
    %1221 = vmatprep.subr.mxu0 0.0
    %1222 = vmatpush1.msra.mxu0 0.0
    %1223 = vmatprep.subr.mxu0 0.0
    %1224 = vmatpush1.msra.mxu0 0.0
    %1225 = vmatprep.subr.mxu0 0.0
    %1226 = vmatpush1.msra.mxu0 0.0
    %1227 = vmatprep.subr.mxu0 0.0
    %1228 = vmatpush1.msra.mxu0 0.0
    %1229 = vmatprep.subr.mxu0 0.0
    %1230 = vmatpush1.msra.mxu0 0.0
    %1231 = vmatprep.subr.mxu0 0.0
    %1232 = vmatpush1.msra.mxu0 0.0
    %1233 = vmatprep.subr.mxu0 0.0
    %1234 = vmatpush1.msra.mxu0 0.0
    %1235 = vmatprep.subr.mxu0 0.0
    %1236 = vmatpush1.msra.mxu0 0.0
    %1237 = vmatprep.subr.mxu0 0.0
    %1238 = vmatpush1.msra.mxu0 0.0
    %1239 = vmatprep.subr.mxu0 0.0
    %1240 = vmatpush1.msra.mxu0 0.0
    %1241 = vmatprep.subr.mxu0 0.0
    %1242 = vmatpush1.msra.mxu0 0.0
    %1243 = vmatprep.subr.mxu0 0.0
    %1244 = vmatpush1.msra.mxu0 0.0
    %1245 = vmatprep.subr.mxu0 0.0
    %1246 = vmatpush1.msra.mxu0 0.0
    %1247 = vmatprep.subr.mxu0 0.0
    %1248 = vmatpush1.msra.mxu0 0.0
    %1249 = vmatprep.subr.mxu0 0.0
    %1250 = vmatpush1.msra.mxu0 0.0
    %1251 = vmatprep.subr.mxu0 0.0
    %1252 = vmatpush1.msra.mxu0 0.0
    %1253 = vmatprep.mubr.f32.mxu0 0.0
    %1254 = vmatmul.mubr.f32.gmra.mrb[0].mxu0 %v1187
    %v1255 = vpop.f32.mrb[0].mxu0
    %v1256 = vadd.f32 %v1184, %v1255
    %v1257 = vpop.f32.mrb[0].mxu0
    %1258 = vdwg.mxu0
    %v1259 = vadd.f32 %v1256, %v687
    %v1260 = vmul.f32 %v1259, 0.01
    %v1261 = vmax.f32 %v1259, %v1260
    %s1262 = scalar_lea.vmem [#allocation2], 192
    %v1263 = vld [vmem:[%s1262] sm:$0xff]
    %v1264 = vld [vmem:[%s1262 + $0x8] sm:$0xff]
    %v1265 = vld [vmem:[%s1262 + $0x10] sm:$0xff]
    %v1266 = vld [vmem:[%s1262 + $0x18] sm:$0xff]
    %s1267 = scalar_lea.vmem %s6, 24
    %v1268 = vld [vmem:[%s1267] sm:$0xff]
    %s1269 = scalar_lea.vmem %s2, 7
    %v1270 = vld [vmem:[%s1269] sm:$0x1]
    %v1272 = vlaneseq
    %v1273 = vshrl.u32 %v1272, 7
    %v1274 = vsub.s32 0, %v1273
    %v1275 = vrot.slane %v1270, %v1274
    %v1278 = vsel %vm446, %v1261, 0
    %1280 = vmatprep.subr.mxu0 0.0
    %1281 = vmatpush1.msra.mxu0 %v1268
    %1282 = vmatprep.subr.mxu0 0.0
    %1283 = vmatpush1.msra.mxu0 0.0
    %1284 = vmatprep.subr.mxu0 0.0
    %1285 = vmatpush1.msra.mxu0 0.0
    %1286 = vmatprep.subr.mxu0 0.0
    %1287 = vmatpush1.msra.mxu0 0.0
    %1288 = vmatprep.subr.mxu0 0.0
    %1289 = vmatpush1.msra.mxu0 0.0
    %1290 = vmatprep.subr.mxu0 0.0
    %1291 = vmatpush1.msra.mxu0 0.0
    %1292 = vmatprep.subr.mxu0 0.0
    %1293 = vmatpush1.msra.mxu0 0.0
    %1294 = vmatprep.subr.mxu0 0.0
    %1295 = vmatpush1.msra.mxu0 0.0
    %1296 = vmatprep.subr.mxu0 0.0
    %1297 = vmatpush1.msra.mxu0 0.0
    %1298 = vmatprep.subr.mxu0 0.0
    %1299 = vmatpush1.msra.mxu0 0.0
    %1300 = vmatprep.subr.mxu0 0.0
    %1301 = vmatpush1.msra.mxu0 0.0
    %1302 = vmatprep.subr.mxu0 0.0
    %1303 = vmatpush1.msra.mxu0 0.0
    %1304 = vmatprep.subr.mxu0 0.0
    %1305 = vmatpush1.msra.mxu0 0.0
    %1306 = vmatprep.subr.mxu0 0.0
    %1307 = vmatpush1.msra.mxu0 0.0
    %1308 = vmatprep.subr.mxu0 0.0
    %1309 = vmatpush1.msra.mxu0 0.0
    %1310 = vmatprep.subr.mxu0 0.0
    %1311 = vmatpush1.msra.mxu0 0.0
    %1312 = vmatprep.subr.mxu0 0.0
    %1313 = vmatpush1.msra.mxu0 0.0
    %1314 = vmatprep.subr.mxu0 0.0
    %1315 = vmatpush1.msra.mxu0 0.0
    %1316 = vmatprep.subr.mxu0 0.0
    %1317 = vmatpush1.msra.mxu0 0.0
    %1318 = vmatprep.subr.mxu0 0.0
    %1319 = vmatpush1.msra.mxu0 0.0
    %1320 = vmatprep.subr.mxu0 0.0
    %1321 = vmatpush1.msra.mxu0 0.0
    %1322 = vmatprep.subr.mxu0 0.0
    %1323 = vmatpush1.msra.mxu0 0.0
    %1324 = vmatprep.subr.mxu0 0.0
    %1325 = vmatpush1.msra.mxu0 0.0
    %1326 = vmatprep.subr.mxu0 0.0
    %1327 = vmatpush1.msra.mxu0 0.0
    %1328 = vmatprep.subr.mxu0 0.0
    %1329 = vmatpush1.msra.mxu0 0.0
    %1330 = vmatprep.subr.mxu0 0.0
    %1331 = vmatpush1.msra.mxu0 0.0
    %1332 = vmatprep.subr.mxu0 0.0
    %1333 = vmatpush1.msra.mxu0 0.0
    %1334 = vmatprep.subr.mxu0 0.0
    %1335 = vmatpush1.msra.mxu0 0.0
    %1336 = vmatprep.subr.mxu0 0.0
    %1337 = vmatpush1.msra.mxu0 0.0
    %1338 = vmatprep.subr.mxu0 0.0
    %1339 = vmatpush1.msra.mxu0 0.0
    %1340 = vmatprep.subr.mxu0 0.0
    %1341 = vmatpush1.msra.mxu0 0.0
    %1342 = vmatprep.subr.mxu0 0.0
    %1343 = vmatpush1.msra.mxu0 0.0
    %1344 = vmatprep.mubr.f32.mxu0 0.0
    %1345 = vmatmul.mubr.f32.gmra.mrb[0].mxu0 %v1278
    %v1346 = vpop.f32.mrb[0].mxu0
    %v1347 = vadd.f32 %v1275, %v1346
    %v1348 = vpop.f32.mrb[0].mxu0
    %1349 = vdwg.mxu0
    %v1351 = vsel %vm159, %v994, 0
    %v1354 = vsel %vm159, %v995, 0
    %1356 = vmatprep.subr.mxu0 0.0
    %1357 = vmatpush1.msra.mxu0 %v1263
    %1358 = vmatprep.subr.mxu0 0.0
    %1359 = vmatpush1.msra.mxu0 %v1264
    %1360 = vmatprep.subr.mxu0 0.0
    %1361 = vmatpush1.msra.mxu0 %v1265
    %1362 = vmatprep.subr.mxu0 0.0
    %1363 = vmatpush1.msra.mxu0 %v1266
    %1364 = vmatprep.subr.mxu0 0.0
    %1365 = vmatpush1.msra.mxu0 0.0
    %1366 = vmatprep.subr.mxu0 0.0
    %1367 = vmatpush1.msra.mxu0 0.0
    %1368 = vmatprep.subr.mxu0 0.0
    %1369 = vmatpush1.msra.mxu0 0.0
    %1370 = vmatprep.subr.mxu0 0.0
    %1371 = vmatpush1.msra.mxu0 0.0
    %1372 = vmatprep.subr.mxu0 0.0
    %1373 = vmatpush1.msra.mxu0 0.0
    %1374 = vmatprep.subr.mxu0 0.0
    %1375 = vmatpush1.msra.mxu0 0.0
    %1376 = vmatprep.subr.mxu0 0.0
    %1377 = vmatpush1.msra.mxu0 0.0
    %1378 = vmatprep.subr.mxu0 0.0
    %1379 = vmatpush1.msra.mxu0 0.0
    %1380 = vmatprep.subr.mxu0 0.0
    %1381 = vmatpush1.msra.mxu0 0.0
    %1382 = vmatprep.subr.mxu0 0.0
    %1383 = vmatpush1.msra.mxu0 0.0
    %1384 = vmatprep.subr.mxu0 0.0
    %1385 = vmatpush1.msra.mxu0 0.0
    %1386 = vmatprep.subr.mxu0 0.0
    %1387 = vmatpush1.msra.mxu0 0.0
    %1388 = vmatprep.subr.mxu0 0.0
    %1389 = vmatpush1.msra.mxu0 0.0
    %1390 = vmatprep.subr.mxu0 0.0
    %1391 = vmatpush1.msra.mxu0 0.0
    %1392 = vmatprep.subr.mxu0 0.0
    %1393 = vmatpush1.msra.mxu0 0.0
    %1394 = vmatprep.subr.mxu0 0.0
    %1395 = vmatpush1.msra.mxu0 0.0
    %1396 = vmatprep.subr.mxu0 0.0
    %1397 = vmatpush1.msra.mxu0 0.0
    %1398 = vmatprep.subr.mxu0 0.0
    %1399 = vmatpush1.msra.mxu0 0.0
    %1400 = vmatprep.subr.mxu0 0.0
    %1401 = vmatpush1.msra.mxu0 0.0
    %1402 = vmatprep.subr.mxu0 0.0
    %1403 = vmatpush1.msra.mxu0 0.0
    %1404 = vmatprep.subr.mxu0 0.0
    %1405 = vmatpush1.msra.mxu0 0.0
    %1406 = vmatprep.subr.mxu0 0.0
    %1407 = vmatpush1.msra.mxu0 0.0
    %1408 = vmatprep.subr.mxu0 0.0
    %1409 = vmatpush1.msra.mxu0 0.0
    %1410 = vmatprep.subr.mxu0 0.0
    %1411 = vmatpush1.msra.mxu0 0.0
    %1412 = vmatprep.subr.mxu0 0.0
    %1413 = vmatpush1.msra.mxu0 0.0
    %1414 = vmatprep.subr.mxu0 0.0
    %1415 = vmatpush1.msra.mxu0 0.0
    %1416 = vmatprep.subr.mxu0 0.0
    %1417 = vmatpush1.msra.mxu0 0.0
    %1418 = vmatprep.subr.mxu0 0.0
    %1419 = vmatpush1.msra.mxu0 0.0
    %1420 = vmatprep.mubr.f32.mxu0 0.0
    %1421 = vmatmul.mubr.f32.gmra.mrb[0].mxu0 %v1351
    %v1422 = vpop.f32.mrb[0].mxu0
    %v1423 = vadd.f32 0.0, %v1422
    %v1424 = vpop.f32.mrb[0].mxu0
    %1425 = vmatprep.mubr.f32.mxu0 0.0
    %1426 = vmatmul.mubr.f32.gmra.mrb[0].mxu0 %v1354
    %v1427 = vpop.f32.mrb[0].mxu0
    %v1428 = vadd.f32 0.0, %v1427
    %v1429 = vpop.f32.mrb[0].mxu0
    %1430 = vdwg.mxu0
    %v1433 = vunpack.c.l.s4 1966171168
    %v1434 = vunpack.c.0.s8 %v1433
    %v1435 = vlaneseq
    %v1436 = vshrl.u32 %v1435, 7
    %v1437 = vsub.s32 %v1434, %v1436
    %v1438 = vrot.slane %v1347, %v1437
    %v1439 = vcombine.high %v1438, %v1438
    %v1441 = vunpack.c.l.s4 1966171168
    %v1442 = vunpack.c.0.s8 %v1441
    %v1443 = vlaneseq
    %v1444 = vshrl.u32 %v1443, 7
    %v1445 = vsub.s32 %v1442, %v1444
    %v1446 = vrot.slane %v1438, %v1445
    %v1448 = vunpack.c.l.s4 1966171168
    %v1449 = vunpack.c.0.s8 %v1448
    %v1450 = vlaneseq
    %v1451 = vshrl.u32 %v1450, 7
    %v1452 = vsub.s32 %v1449, %v1451
    %v1453 = vrot.slane %v1439, %v1452
    %v1454 = vlaneseq
    %v1455 = vshrl.u32 %v1454, 7
    %v1456 = vsub.s32 0, %v1455
    %v1457 = vrot.slane %v1446, %v1456
    %v1458 = vlaneseq
    %v1459 = vshrl.u32 %v1458, 7
    %v1460 = vsub.s32 0, %v1459
    %v1461 = vrot.slane %v1453, %v1460
    %v1464 = vadd.f32 %v1423, %v1457
    %v1465 = vadd.f32 %v1428, %v1461
    %v1466 = vmul.f32 %v1464, 0.01
    %v1467 = vmul.f32 %v1465, 0.01
    %v1468 = vmax.f32 %v1464, %v1466
    %v1469 = vmax.f32 %v1465, %v1467
    %s1470 = scalar_lea.vmem [#allocation2], 224
    %v1471 = vld [vmem:[%s1470] sm:$0xff]
    %v1472 = vld [vmem:[%s1470 + $0x8] sm:$0xff]
    %v1473 = vld [vmem:[%s1470 + $0x10] sm:$0xff]
    %v1474 = vld [vmem:[%s1470 + $0x18] sm:$0xff]
    %s1475 = scalar_lea.vmem %s2, 8
    %v1476 = vld [vmem:[%s1475] sm:$0x1]
    %v1478 = vlaneseq
    %v1479 = vshrl.u32 %v1478, 7
    %v1480 = vsub.s32 0, %v1479
    %v1481 = vrot.slane %v1476, %v1480
    %v1484 = vsel %vm159, %v1468, 0
    %v1487 = vsel %vm159, %v1469, 0
    %1489 = vmatprep.subr.mxu0 0.0
    %1490 = vmatpush1.msra.mxu0 %v1471
    %1491 = vmatprep.subr.mxu0 0.0
    %1492 = vmatpush1.msra.mxu0 %v1472
    %1493 = vmatprep.subr.mxu0 0.0
    %1494 = vmatpush1.msra.mxu0 %v1473
    %1495 = vmatprep.subr.mxu0 0.0
    %1496 = vmatpush1.msra.mxu0 %v1474
    %1497 = vmatprep.subr.mxu0 0.0
    %1498 = vmatpush1.msra.mxu0 0.0
    %1499 = vmatprep.subr.mxu0 0.0
    %1500 = vmatpush1.msra.mxu0 0.0
    %1501 = vmatprep.subr.mxu0 0.0
    %1502 = vmatpush1.msra.mxu0 0.0
    %1503 = vmatprep.subr.mxu0 0.0
    %1504 = vmatpush1.msra.mxu0 0.0
    %1505 = vmatprep.subr.mxu0 0.0
    %1506 = vmatpush1.msra.mxu0 0.0
    %1507 = vmatprep.subr.mxu0 0.0
    %1508 = vmatpush1.msra.mxu0 0.0
    %1509 = vmatprep.subr.mxu0 0.0
    %1510 = vmatpush1.msra.mxu0 0.0
    %1511 = vmatprep.subr.mxu0 0.0
    %1512 = vmatpush1.msra.mxu0 0.0
    %1513 = vmatprep.subr.mxu0 0.0
    %1514 = vmatpush1.msra.mxu0 0.0
    %1515 = vmatprep.subr.mxu0 0.0
    %1516 = vmatpush1.msra.mxu0 0.0
    %1517 = vmatprep.subr.mxu0 0.0
    %1518 = vmatpush1.msra.mxu0 0.0
    %1519 = vmatprep.subr.mxu0 0.0
    %1520 = vmatpush1.msra.mxu0 0.0
    %1521 = vmatprep.subr.mxu0 0.0
    %1522 = vmatpush1.msra.mxu0 0.0
    %1523 = vmatprep.subr.mxu0 0.0
    %1524 = vmatpush1.msra.mxu0 0.0
    %1525 = vmatprep.subr.mxu0 0.0
    %1526 = vmatpush1.msra.mxu0 0.0
    %1527 = vmatprep.subr.mxu0 0.0
    %1528 = vmatpush1.msra.mxu0 0.0
    %1529 = vmatprep.subr.mxu0 0.0
    %1530 = vmatpush1.msra.mxu0 0.0
    %1531 = vmatprep.subr.mxu0 0.0
    %1532 = vmatpush1.msra.mxu0 0.0
    %1533 = vmatprep.subr.mxu0 0.0
    %1534 = vmatpush1.msra.mxu0 0.0
    %1535 = vmatprep.subr.mxu0 0.0
    %1536 = vmatpush1.msra.mxu0 0.0
    %1537 = vmatprep.subr.mxu0 0.0
    %1538 = vmatpush1.msra.mxu0 0.0
    %1539 = vmatprep.subr.mxu0 0.0
    %1540 = vmatpush1.msra.mxu0 0.0
    %1541 = vmatprep.subr.mxu0 0.0
    %1542 = vmatpush1.msra.mxu0 0.0
    %1543 = vmatprep.subr.mxu0 0.0
    %1544 = vmatpush1.msra.mxu0 0.0
    %1545 = vmatprep.subr.mxu0 0.0
    %1546 = vmatpush1.msra.mxu0 0.0
    %1547 = vmatprep.subr.mxu0 0.0
    %1548 = vmatpush1.msra.mxu0 0.0
    %1549 = vmatprep.subr.mxu0 0.0
    %1550 = vmatpush1.msra.mxu0 0.0
    %1551 = vmatprep.subr.mxu0 0.0
    %1552 = vmatpush1.msra.mxu0 0.0
    %1553 = vmatprep.mubr.f32.mxu0 0.0
    %1554 = vmatmul.mubr.f32.gmra.mrb[0].mxu0 %v1484
    %v1555 = vpop.f32.mrb[0].mxu0
    %v1556 = vadd.f32 %v1481, %v1555
    %v1557 = vpop.f32.mrb[0].mxu0
    %1558 = vmatprep.mubr.f32.mxu0 0.0
    %1559 = vmatmul.mubr.f32.gmra.mrb[0].mxu0 %v1487
    %v1560 = vpop.f32.mrb[0].mxu0
    %v1561 = vadd.f32 %v1481, %v1560
    %v1562 = vpop.f32.mrb[0].mxu0
    %1563 = vdwg.mxu0
    %v1564 = vadd.f32 %v1556, %v994
    %v1565 = vadd.f32 %v1561, %v995
    %v1566 = vmul.f32 %v1564, 0.01
    %v1567 = vmul.f32 %v1565, 0.01
    %v1568 = vmax.f32 %v1564, %v1566
    %v1569 = vmax.f32 %v1565, %v1567
    %v1570 = vsel %vm159, %v1568, 0.0
    %v1571 = vrot.slane %v1570, 4
    %v1572 = vadd.f32 %v1570, %v1571
    %v1573 = vrot.slane %v1572, 2
    %v1574 = vadd.f32 %v1572, %v1573
    %v1575 = vrot.slane %v1574, 1
    %v1576 = vadd.f32 %v1574, %v1575
    %v1577 = vsel %vm159, %v1569, 0.0
    %v1578 = vrot.slane %v1577, 4
    %v1579 = vadd.f32 %v1577, %v1578
    %v1580 = vrot.slane %v1579, 2
    %v1581 = vadd.f32 %v1579, %v1580
    %v1582 = vrot.slane %v1581, 1
    %v1583 = vadd.f32 %v1581, %v1582
    %s1584 = scalar_lea.vmem [#allocation2], 256
    %v1585 = vld [vmem:[%s1584] sm:$0xff]
    %v1586 = vld [vmem:[%s1584 + $0x8] sm:$0xff]
    %v1587 = vld [vmem:[%s1584 + $0x10] sm:$0xff]
    %v1588 = vld [vmem:[%s1584 + $0x18] sm:$0xff]
    %s1589 = scalar_lea.vmem %s6, 32
    %v1590 = vld [vmem:[%s1589] sm:$0xff]
    %s1591 = scalar_lea.vmem %s2, 9
    %v1592 = vld [vmem:[%s1591] sm:$0x1]
    %1593 = vmatprep.subr.mxu0 0.0
    %1594 = vmatpush1.msra.mxu0 %v1590
    %1595 = vmatprep.subr.mxu0 0.0
    %1596 = vmatpush1.msra.mxu0 0.0
    %1597 = vmatprep.subr.mxu0 0.0
    %1598 = vmatpush1.msra.mxu0 0.0
    %1599 = vmatprep.subr.mxu0 0.0
    %1600 = vmatpush1.msra.mxu0 0.0
    %1601 = vmatprep.subr.mxu0 0.0
    %1602 = vmatpush1.msra.mxu0 0.0
    %1603 = vmatprep.subr.mxu0 0.0
    %1604 = vmatpush1.msra.mxu0 0.0
    %1605 = vmatprep.subr.mxu0 0.0
    %1606 = vmatpush1.msra.mxu0 0.0
    %1607 = vmatprep.subr.mxu0 0.0
    %1608 = vmatpush1.msra.mxu0 0.0
    %1609 = vmatprep.subr.mxu0 0.0
    %1610 = vmatpush1.msra.mxu0 0.0
    %1611 = vmatprep.subr.mxu0 0.0
    %1612 = vmatpush1.msra.mxu0 0.0
    %1613 = vmatprep.subr.mxu0 0.0
    %1614 = vmatpush1.msra.mxu0 0.0
    %1615 = vmatprep.subr.mxu0 0.0
    %1616 = vmatpush1.msra.mxu0 0.0
    %1617 = vmatprep.subr.mxu0 0.0
    %1618 = vmatpush1.msra.mxu0 0.0
    %1619 = vmatprep.subr.mxu0 0.0
    %1620 = vmatpush1.msra.mxu0 0.0
    %1621 = vmatprep.subr.mxu0 0.0
    %1622 = vmatpush1.msra.mxu0 0.0
    %1623 = vmatprep.subr.mxu0 0.0
    %1624 = vmatpush1.msra.mxu0 0.0
    %1625 = vmatprep.subr.mxu0 0.0
    %1626 = vmatpush1.msra.mxu0 0.0
    %1627 = vmatprep.subr.mxu0 0.0
    %1628 = vmatpush1.msra.mxu0 0.0
    %1629 = vmatprep.subr.mxu0 0.0
    %1630 = vmatpush1.msra.mxu0 0.0
    %1631 = vmatprep.subr.mxu0 0.0
    %1632 = vmatpush1.msra.mxu0 0.0
    %1633 = vmatprep.subr.mxu0 0.0
    %1634 = vmatpush1.msra.mxu0 0.0
    %1635 = vmatprep.subr.mxu0 0.0
    %1636 = vmatpush1.msra.mxu0 0.0
    %1637 = vmatprep.subr.mxu0 0.0
    %1638 = vmatpush1.msra.mxu0 0.0
    %1639 = vmatprep.subr.mxu0 0.0
    %1640 = vmatpush1.msra.mxu0 0.0
    %1641 = vmatprep.subr.mxu0 0.0
    %1642 = vmatpush1.msra.mxu0 0.0
    %1643 = vmatprep.subr.mxu0 0.0
    %1644 = vmatpush1.msra.mxu0 0.0
    %1645 = vmatprep.subr.mxu0 0.0
    %1646 = vmatpush1.msra.mxu0 0.0
    %1647 = vmatprep.subr.mxu0 0.0
    %1648 = vmatpush1.msra.mxu0 0.0
    %1649 = vmatprep.subr.mxu0 0.0
    %1650 = vmatpush1.msra.mxu0 0.0
    %1651 = vmatprep.subr.mxu0 0.0
    %1652 = vmatpush1.msra.mxu0 0.0
    %1653 = vmatprep.subr.mxu0 0.0
    %1654 = vmatpush1.msra.mxu0 0.0
    %1655 = vmatprep.subr.mxu0 0.0
    %1656 = vmatpush1.msra.mxu0 0.0
    %1657 = vmatprep.mubr.f32.mxu0 0.0
    %1658 = vmatmul.mubr.f32.gmra.mrb[0].mxu0 %v1278
    %v1659 = vpop.f32.mrb[0].mxu0
    %v1660 = vadd.f32 0.0, %v1659
    %v1661 = vpop.f32.mrb[0].mxu0
    %1662 = vdwg.mxu0
    %v1665 = vsel %vm276, %v1583, %v1576
    %v1666 = vsel %vm159, %v1665, 0
    %1668 = vmatprep.subr.mxu0 0.0
    %1669 = vmatpush1.msra.mxu0 %v1585
    %1670 = vmatprep.subr.mxu0 0.0
    %1671 = vmatpush1.msra.mxu0 %v1586
    %1672 = vmatprep.subr.mxu0 0.0
    %1673 = vmatpush1.msra.mxu0 %v1587
    %1674 = vmatprep.subr.mxu0 0.0
    %1675 = vmatpush1.msra.mxu0 %v1588
    %1676 = vmatprep.subr.mxu0 0.0
    %1677 = vmatpush1.msra.mxu0 0.0
    %1678 = vmatprep.subr.mxu0 0.0
    %1679 = vmatpush1.msra.mxu0 0.0
    %1680 = vmatprep.subr.mxu0 0.0
    %1681 = vmatpush1.msra.mxu0 0.0
    %1682 = vmatprep.subr.mxu0 0.0
    %1683 = vmatpush1.msra.mxu0 0.0
    %1684 = vmatprep.subr.mxu0 0.0
    %1685 = vmatpush1.msra.mxu0 0.0
    %1686 = vmatprep.subr.mxu0 0.0
    %1687 = vmatpush1.msra.mxu0 0.0
    %1688 = vmatprep.subr.mxu0 0.0
    %1689 = vmatpush1.msra.mxu0 0.0
    %1690 = vmatprep.subr.mxu0 0.0
    %1691 = vmatpush1.msra.mxu0 0.0
    %1692 = vmatprep.subr.mxu0 0.0
    %1693 = vmatpush1.msra.mxu0 0.0
    %1694 = vmatprep.subr.mxu0 0.0
    %1695 = vmatpush1.msra.mxu0 0.0
    %1696 = vmatprep.subr.mxu0 0.0
    %1697 = vmatpush1.msra.mxu0 0.0
    %1698 = vmatprep.subr.mxu0 0.0
    %1699 = vmatpush1.msra.mxu0 0.0
    %1700 = vmatprep.subr.mxu0 0.0
    %1701 = vmatpush1.msra.mxu0 0.0
    %1702 = vmatprep.subr.mxu0 0.0
    %1703 = vmatpush1.msra.mxu0 0.0
    %1704 = vmatprep.subr.mxu0 0.0
    %1705 = vmatpush1.msra.mxu0 0.0
    %1706 = vmatprep.subr.mxu0 0.0
    %1707 = vmatpush1.msra.mxu0 0.0
    %1708 = vmatprep.subr.mxu0 0.0
    %1709 = vmatpush1.msra.mxu0 0.0
    %1710 = vmatprep.subr.mxu0 0.0
    %1711 = vmatpush1.msra.mxu0 0.0
    %1712 = vmatprep.subr.mxu0 0.0
    %1713 = vmatpush1.msra.mxu0 0.0
    %1714 = vmatprep.subr.mxu0 0.0
    %1715 = vmatpush1.msra.mxu0 0.0
    %1716 = vmatprep.subr.mxu0 0.0
    %1717 = vmatpush1.msra.mxu0 0.0
    %1718 = vmatprep.subr.mxu0 0.0
    %1719 = vmatpush1.msra.mxu0 0.0
    %1720 = vmatprep.subr.mxu0 0.0
    %1721 = vmatpush1.msra.mxu0 0.0
    %1722 = vmatprep.subr.mxu0 0.0
    %1723 = vmatpush1.msra.mxu0 0.0
    %1724 = vmatprep.subr.mxu0 0.0
    %1725 = vmatpush1.msra.mxu0 0.0
    %1726 = vmatprep.subr.mxu0 0.0
    %1727 = vmatpush1.msra.mxu0 0.0
    %1728 = vmatprep.subr.mxu0 0.0
    %1729 = vmatpush1.msra.mxu0 0.0
    %1730 = vmatprep.subr.mxu0 0.0
    %1731 = vmatpush1.msra.mxu0 0.0
    %1732 = vmatprep.mubr.f32.mxu0 0.0
    %1733 = vmatmul.mubr.f32.gmra.mrb[0].mxu0 %v1666
    %v1734 = vpop.f32.mrb[0].mxu0
    %v1735 = vadd.f32 %v1660, %v1734
    %v1736 = vpop.f32.mrb[0].mxu0
    %1737 = vdwg.mxu0
    %v1739 = vlaneseq
    %v1740 = vshrl.u32 %v1739, 7
    %v1741 = vsub.s32 0, %v1740
    %v1742 = vrot.slane %v1592, %v1741
    %v1744 = vadd.f32 %v1735, %v1742
    %v1745 = vmul.f32 %v1744, 0.01
    %v1746 = vmax.f32 %v1744, %v1745
    %s1747 = scalar_lea.vmem [#allocation2], 288
    %v1748 = vld [vmem:[%s1747] sm:$0xff]
    %v1749 = vld [vmem:[%s1747 + $0x8] sm:$0xff]
    %v1750 = vld [vmem:[%s1747 + $0x10] sm:$0xff]
    %v1751 = vld [vmem:[%s1747 + $0x18] sm:$0xff]
    %s1752 = scalar_lea.vmem %s2, 10
    %v1753 = vld [vmem:[%s1752] sm:$0x1]
    %v1755 = vlaneseq
    %v1756 = vshrl.u32 %v1755, 7
    %v1757 = vsub.s32 0, %v1756
    %v1758 = vrot.slane %v1753, %v1757
    %v1761 = vsel %vm159, %v1746, 0
    %1763 = vmatprep.subr.mxu0 0.0
    %1764 = vmatpush1.msra.mxu0 %v1748
    %1765 = vmatprep.subr.mxu0 0.0
    %1766 = vmatpush1.msra.mxu0 %v1749
    %1767 = vmatprep.subr.mxu0 0.0
    %1768 = vmatpush1.msra.mxu0 %v1750
    %1769 = vmatprep.subr.mxu0 0.0
    %1770 = vmatpush1.msra.mxu0 %v1751
    %1771 = vmatprep.subr.mxu0 0.0
    %1772 = vmatpush1.msra.mxu0 0.0
    %1773 = vmatprep.subr.mxu0 0.0
    %1774 = vmatpush1.msra.mxu0 0.0
    %1775 = vmatprep.subr.mxu0 0.0
    %1776 = vmatpush1.msra.mxu0 0.0
    %1777 = vmatprep.subr.mxu0 0.0
    %1778 = vmatpush1.msra.mxu0 0.0
    %1779 = vmatprep.subr.mxu0 0.0
    %1780 = vmatpush1.msra.mxu0 0.0
    %1781 = vmatprep.subr.mxu0 0.0
    %1782 = vmatpush1.msra.mxu0 0.0
    %1783 = vmatprep.subr.mxu0 0.0
    %1784 = vmatpush1.msra.mxu0 0.0
    %1785 = vmatprep.subr.mxu0 0.0
    %1786 = vmatpush1.msra.mxu0 0.0
    %1787 = vmatprep.subr.mxu0 0.0
    %1788 = vmatpush1.msra.mxu0 0.0
    %1789 = vmatprep.subr.mxu0 0.0
    %1790 = vmatpush1.msra.mxu0 0.0
    %1791 = vmatprep.subr.mxu0 0.0
    %1792 = vmatpush1.msra.mxu0 0.0
    %1793 = vmatprep.subr.mxu0 0.0
    %1794 = vmatpush1.msra.mxu0 0.0
    %1795 = vmatprep.subr.mxu0 0.0
    %1796 = vmatpush1.msra.mxu0 0.0
    %1797 = vmatprep.subr.mxu0 0.0
    %1798 = vmatpush1.msra.mxu0 0.0
    %1799 = vmatprep.subr.mxu0 0.0
    %1800 = vmatpush1.msra.mxu0 0.0
    %1801 = vmatprep.subr.mxu0 0.0
    %1802 = vmatpush1.msra.mxu0 0.0
    %1803 = vmatprep.subr.mxu0 0.0
    %1804 = vmatpush1.msra.mxu0 0.0
    %1805 = vmatprep.subr.mxu0 0.0
    %1806 = vmatpush1.msra.mxu0 0.0
    %1807 = vmatprep.subr.mxu0 0.0
    %1808 = vmatpush1.msra.mxu0 0.0
    %1809 = vmatprep.subr.mxu0 0.0
    %1810 = vmatpush1.msra.mxu0 0.0
    %1811 = vmatprep.subr.mxu0 0.0
    %1812 = vmatpush1.msra.mxu0 0.0
    %1813 = vmatprep.subr.mxu0 0.0
    %1814 = vmatpush1.msra.mxu0 0.0
    %1815 = vmatprep.subr.mxu0 0.0
    %1816 = vmatpush1.msra.mxu0 0.0
    %1817 = vmatprep.subr.mxu0 0.0
    %1818 = vmatpush1.msra.mxu0 0.0
    %1819 = vmatprep.subr.mxu0 0.0
    %1820 = vmatpush1.msra.mxu0 0.0
    %1821 = vmatprep.subr.mxu0 0.0
    %1822 = vmatpush1.msra.mxu0 0.0
    %1823 = vmatprep.subr.mxu0 0.0
    %1824 = vmatpush1.msra.mxu0 0.0
    %1825 = vmatprep.subr.mxu0 0.0
    %1826 = vmatpush1.msra.mxu0 0.0
    %1827 = vmatprep.mubr.f32.mxu0 0.0
    %1828 = vmatmul.mubr.f32.gmra.mrb[0].mxu0 %v1761
    %v1829 = vpop.f32.mrb[0].mxu0
    %v1830 = vadd.f32 %v1758, %v1829
    %v1831 = vpop.f32.mrb[0].mxu0
    %1832 = vdwg.mxu0
    %v1833 = vadd.f32 %v1830, %v1746
    %v1834 = vmul.f32 %v1833, 0.01
    %v1835 = vmax.f32 %v1833, %v1834
    %v1836 = vld [vmem:[%s7] sm:$0xff]
    %v1837 = vld [vmem:[%s7 + $0x8] sm:$0xff]
    %v1838 = vld [vmem:[%s7 + $0x10] sm:$0xff]
    %v1839 = vld [vmem:[%s7 + $0x18] sm:$0xff]
    %v1840 = vld [vmem:[%s8] sm:$0x1]
    %v1842 = vlaneseq
    %v1843 = vshrl.u32 %v1842, 7
    %v1844 = vsub.s32 0, %v1843
    %v1845 = vrot.slane %v1840, %v1844
    %v1848 = vsel %vm159, %v1835, 0
    %1850 = vmatprep.subr.mxu0 0.0
    %1851 = vmatpush1.msra.mxu0 %v1836
    %1852 = vmatprep.subr.mxu0 0.0
    %1853 = vmatpush1.msra.mxu0 %v1837
    %1854 = vmatprep.subr.mxu0 0.0
    %1855 = vmatpush1.msra.mxu0 %v1838
    %1856 = vmatprep.subr.mxu0 0.0
    %1857 = vmatpush1.msra.mxu0 %v1839
    %1858 = vmatprep.subr.mxu0 0.0
    %1859 = vmatpush1.msra.mxu0 0.0
    %1860 = vmatprep.subr.mxu0 0.0
    %1861 = vmatpush1.msra.mxu0 0.0
    %1862 = vmatprep.subr.mxu0 0.0
    %1863 = vmatpush1.msra.mxu0 0.0
    %1864 = vmatprep.subr.mxu0 0.0
    %1865 = vmatpush1.msra.mxu0 0.0
    %1866 = vmatprep.subr.mxu0 0.0
    %1867 = vmatpush1.msra.mxu0 0.0
    %1868 = vmatprep.subr.mxu0 0.0
    %1869 = vmatpush1.msra.mxu0 0.0
    %1870 = vmatprep.subr.mxu0 0.0
    %1871 = vmatpush1.msra.mxu0 0.0
    %1872 = vmatprep.subr.mxu0 0.0
    %1873 = vmatpush1.msra.mxu0 0.0
    %1874 = vmatprep.subr.mxu0 0.0
    %1875 = vmatpush1.msra.mxu0 0.0
    %1876 = vmatprep.subr.mxu0 0.0
    %1877 = vmatpush1.msra.mxu0 0.0
    %1878 = vmatprep.subr.mxu0 0.0
    %1879 = vmatpush1.msra.mxu0 0.0
    %1880 = vmatprep.subr.mxu0 0.0
    %1881 = vmatpush1.msra.mxu0 0.0
    %1882 = vmatprep.subr.mxu0 0.0
    %1883 = vmatpush1.msra.mxu0 0.0
    %1884 = vmatprep.subr.mxu0 0.0
    %1885 = vmatpush1.msra.mxu0 0.0
    %1886 = vmatprep.subr.mxu0 0.0
    %1887 = vmatpush1.msra.mxu0 0.0
    %1888 = vmatprep.subr.mxu0 0.0
    %1889 = vmatpush1.msra.mxu0 0.0
    %1890 = vmatprep.subr.mxu0 0.0
    %1891 = vmatpush1.msra.mxu0 0.0
    %1892 = vmatprep.subr.mxu0 0.0
    %1893 = vmatpush1.msra.mxu0 0.0
    %1894 = vmatprep.subr.mxu0 0.0
    %1895 = vmatpush1.msra.mxu0 0.0
    %1896 = vmatprep.subr.mxu0 0.0
    %1897 = vmatpush1.msra.mxu0 0.0
    %1898 = vmatprep.subr.mxu0 0.0
    %1899 = vmatpush1.msra.mxu0 0.0
    %1900 = vmatprep.subr.mxu0 0.0
    %1901 = vmatpush1.msra.mxu0 0.0
    %1902 = vmatprep.subr.mxu0 0.0
    %1903 = vmatpush1.msra.mxu0 0.0
    %1904 = vmatprep.subr.mxu0 0.0
    %1905 = vmatpush1.msra.mxu0 0.0
    %1906 = vmatprep.subr.mxu0 0.0
    %1907 = vmatpush1.msra.mxu0 0.0
    %1908 = vmatprep.subr.mxu0 0.0
    %1909 = vmatpush1.msra.mxu0 0.0
    %1910 = vmatprep.subr.mxu0 0.0
    %1911 = vmatpush1.msra.mxu0 0.0
    %1912 = vmatprep.subr.mxu0 0.0
    %1913 = vmatpush1.msra.mxu0 0.0
    %1914 = vmatprep.mubr.f32.mxu0 0.0
    %1915 = vmatmul.mubr.f32.gmra.mrb[0].mxu0 %v1848
    %v1916 = vpop.f32.mrb[0].mxu0
    %v1917 = vadd.f32 %v1845, %v1916
    %v1918 = vpop.f32.mrb[0].mxu0
    %1919 = vdwg.mxu0
    %1920 = vst [vmem:[#allocation5] sm:$0x3] %v1917
    // Predicated region
    $region42: #{tpu_custom_call.1} parent=1 // pred_check
      _
    $region43: #{tpu_custom_call.1} parent=1 // pred_check_branch
      %1922 = sbr.rel (0) target = $region45
    $region44: #{tpu_custom_call.1} parent=1 // pred_region
      %s1924 = ssub.s32 32, 32
      %1925 = vsyncadd [#allocation4], %s1924
      %s1927 = sshll.u32 [#allocation5], 4
      %s1928 = int_to_ptr.vmem [resolvable:$true] %s1927
      %1930 = dma.vmem_to_hbm [thread:$0]  %s1928, 32, %s9, [#allocation4]
    $region45: #{tpu_custom_call.1} parent=1 // pred_fallthru
      _
    // Predicated region
    $region46: #{tpu_custom_call.1} parent=1 // pred_check
      _
    $region47: #{tpu_custom_call.1} parent=1 // pred_check_branch
      %1932 = sbr.rel (0) target = $region49
    $region48: #{tpu_custom_call.1} parent=1 // pred_region
      %1933 = dma.done [#allocation4], 32
    $region49: #{tpu_custom_call.1} parent=1 // pred_fallthru
      _
    %1934 = vsyncpa [#allocation3], 1
    %1935 = vsyncpa [#allocation4], 1

</llo_original>
